<compile_context>
chip_gen: v6e
topology: v6e:2x2x1
jax: 0.10.0
libtpu: 0.0.40
codegen_flags: <defaults>
</compile_context>

<pallas_src>
import math
import functools

import jax
import jax.numpy as jnp
from jax.experimental import pallas as pl
from jax.experimental.pallas import tpu as pltpu


def _mha_kernel(q_ref, k_ref, v_ref, w_ref, b_ref, out_ref, *, n_heads, head_dim):
    """Single invocation over the full batch.

    q_ref/k_ref/v_ref : (B, L, H)      VMEM
    w_ref             : (4, H, H)      stacked [Wq^T, Wk^T, Wv^T, Wo^T]  (x @ W form)
    b_ref             : (4, 1, H)      stacked [bq, bk, bv, bo]
    out_ref           : (B, L, H)
    """
    B, L, H = q_ref.shape
    BL = B * L
    G = n_heads * B
    scale = 1.0 / math.sqrt(head_dim)

    # Collapse (B, L) -> rows; the lane (last) dim is untouched, so this is cheap.
    q2 = q_ref[...].reshape(BL, H)
    k2 = k_ref[...].reshape(BL, H)
    v2 = v_ref[...].reshape(BL, H)

    # One full-width matmul per projection (single MXU pass each; no broadcasts,
    # no per-head N=8 matmuls).  The 1/sqrt(head_dim) scale is folded into Q once.
    Q2 = (jnp.dot(q2, w_ref[0], preferred_element_type=jnp.float32) + b_ref[0]) * scale
    K2 = jnp.dot(k2, w_ref[1], preferred_element_type=jnp.float32) + b_ref[1]
    V2 = jnp.dot(v2, w_ref[2], preferred_element_type=jnp.float32) + b_ref[2]

    # Split heads: (BL, H) -> (G = n_heads*B, L, hd), grouped as g = h*B + b.
    # Head extraction is a static 8-wide lane slice (XLU, otherwise-idle slot);
    # the batch split is a tile-aligned sublane split; the stack/reshape only
    # touch major dims.
    def split_heads(x2):
        parts = [x2[:, h * head_dim:(h + 1) * head_dim].reshape(B, L, head_dim)
                 for h in range(n_heads)]
        return jnp.stack(parts, axis=0).reshape(G, L, head_dim)

    Qg = split_heads(Q2)
    Kg = split_heads(K2)
    Vg = split_heads(V2)

    # energy = Q K^T / sqrt(hd) (scale already folded into Q; no materialized K.T).
    energy = jnp.einsum("gqd,gkd->gqk", Qg, Kg, preferred_element_type=jnp.float32)

    # TODO(synk): mask branch (masked_fill) and train-mode dropout not implemented
    #             (module is evaluated with mask=None, dropout in eval mode).
    e_max = jnp.max(energy, axis=-1, keepdims=True)
    p = jnp.exp(energy - e_max)
    denom = jnp.sum(p, axis=-1, keepdims=True)
    # Exact reciprocal keeps the fp32 1e-4 tolerance; approx=True (EUP) is the
    # optional free lever if the tolerance is ever relaxed.
    attn = p * pl.reciprocal(denom, approx=False)

    ctx = jnp.einsum("gqk,gkd->gqd", attn, Vg, preferred_element_type=jnp.float32)  # (G,L,hd)

    # Merge heads back along lanes (XLU concat) and run ONE (BL,H)@(H,H) output
    # projection instead of 4 per-head partial matmuls + a head-sum.
    ctx4 = ctx.reshape(n_heads, B, L, head_dim)
    ctx2 = jnp.concatenate([ctx4[h] for h in range(n_heads)], axis=-1).reshape(BL, H)
    out2 = jnp.dot(ctx2, w_ref[3], preferred_element_type=jnp.float32) + b_ref[3]
    out_ref[...] = out2.reshape(B, L, H).astype(out_ref.dtype)


def multi_head_attention(query, key, value, params, *, n_heads):
    """query/key/value: (B, L, H) float32. params: dict of torch-style Linear weights."""
    B, L, H = query.shape
    head_dim = H // n_heads

    # torch Linear weights are (out, in); transpose to x @ W form and pack all
    # weights / biases into two arrays so the kernel sees 5 operands, not 11.
    w_all = jnp.stack([params["wq"].T, params["wk"].T,
                       params["wv"].T, params["wo"].T])            # (4, H, H)
    b_all = jnp.stack([params["bq"], params["bk"],
                       params["bv"], params["bo"]])[:, None, :]    # (4, 1, H)

    kernel = functools.partial(_mha_kernel, n_heads=n_heads, head_dim=head_dim)
    vmem_spec = pl.BlockSpec(memory_space=pltpu.MemorySpace.VMEM)

    return pl.pallas_call(
        kernel,
        out_shape=jax.ShapeDtypeStruct((B, L, H), query.dtype),
        in_specs=[vmem_spec] * 5,
        out_specs=vmem_spec,
    )(query, key, value, w_all, b_all)


def _reference(query, key, value, params, *, n_heads):
    """Pure-JAX reference mirroring the PyTorch forward (mask=None, eval dropout)."""
    B, L, H = query.shape
    hd = H // n_heads
    Q = query @ params["wq"].T + params["bq"]
    K = key @ params["wk"].T + params["bk"]
    V = value @ params["wv"].T + params["bv"]
    Q = Q.reshape(B, L, n_heads, hd).transpose(0, 2, 1, 3)
    K = K.reshape(B, L, n_heads, hd).transpose(0, 2, 1, 3)
    V = V.reshape(B, L, n_heads, hd).transpose(0, 2, 1, 3)
    energy = jnp.einsum("bhqd,bhkd->bhqk", Q, K) / jnp.sqrt(jnp.float32(hd))
    attn = jax.nn.softmax(energy, axis=-1)
    x = jnp.einsum("bhqk,bhkd->bhqd", attn, V)
    x = x.transpose(0, 2, 1, 3).reshape(B, L, H)
    return x @ params["wo"].T + params["bo"]


if __name__ == "__main__":
    # Small shapes consistent with the module.
    batch, seq, hid_dim, n_heads = 2, 8, 32, 4

    key = jax.random.PRNGKey(0)
    ks = jax.random.split(key, 12)

    # Deterministic synthetic parameters (torch Linear convention: W is (out, in)).
    bound = 1.0 / math.sqrt(hid_dim)
    params = {
        "wq": jax.random.uniform(ks[0], (hid_dim, hid_dim), jnp.float32, -bound, bound),
        "bq": jax.random.uniform(ks[1], (hid_dim,), jnp.float32, -bound, bound),
        "wk": jax.random.uniform(ks[2], (hid_dim, hid_dim), jnp.float32, -bound, bound),
        "bk": jax.random.uniform(ks[3], (hid_dim,), jnp.float32, -bound, bound),
        "wv": jax.random.uniform(ks[4], (hid_dim, hid_dim), jnp.float32, -bound, bound),
        "bv": jax.random.uniform(ks[5], (hid_dim,), jnp.float32, -bound, bound),
        "wo": jax.random.uniform(ks[6], (hid_dim, hid_dim), jnp.float32, -bound, bound),
        "bo": jax.random.uniform(ks[7], (hid_dim,), jnp.float32, -bound, bound),
    }

    query = jax.random.normal(ks[8], (batch, seq, hid_dim), jnp.float32)
    key_in = jax.random.normal(ks[9], (batch, seq, hid_dim), jnp.float32)
    value = jax.random.normal(ks[10], (batch, seq, hid_dim), jnp.float32)

    out = multi_head_attention(query, key_in, value, params, n_heads=n_heads)
    out = jax.block_until_ready(out)

    ref = _reference(query, key_in, value, params, n_heads=n_heads)
    assert out.shape == (batch, seq, hid_dim)
    assert jnp.allclose(out, ref, atol=1e-4, rtol=1e-4), \
        f"max abs err {jnp.max(jnp.abs(out - ref))}"

    print("KERNEL_OK")
</pallas_src>

<mosaic_0001>
module attributes {stable_mosaic.version = 11 : i64} {
  func.func @_mha_kernel(%arg0: memref<2x8x32xf32, #tpu.memory_space<vmem>>, %arg1: memref<2x8x32xf32, #tpu.memory_space<vmem>>, %arg2: memref<2x8x32xf32, #tpu.memory_space<vmem>>, %arg3: memref<4x32x32xf32, #tpu.memory_space<vmem>>, %arg4: memref<4x1x32xf32, #tpu.memory_space<vmem>>, %arg5: memref<2x8x32xf32, #tpu.memory_space<vmem>>) attributes {dimension_semantics = [], scalar_prefetch = 0 : i64, scratch_operands = 0 : i64, tpu.core_type = #tpu.core_type<tc>} {
    %c0 = arith.constant 0 : index
    %c0_0 = arith.constant 0 : index
    %c0_1 = arith.constant 0 : index
    %0 = vector.load %arg0[%c0, %c0_0, %c0_1] : memref<2x8x32xf32, #tpu.memory_space<vmem>>, vector<2x8x32xf32>
    %1 = vector.shape_cast %0 : vector<2x8x32xf32> to vector<16x32xf32>
    %c0_2 = arith.constant 0 : index
    %c0_3 = arith.constant 0 : index
    %c0_4 = arith.constant 0 : index
    %2 = vector.load %arg1[%c0_2, %c0_3, %c0_4] : memref<2x8x32xf32, #tpu.memory_space<vmem>>, vector<2x8x32xf32>
    %3 = vector.shape_cast %2 : vector<2x8x32xf32> to vector<16x32xf32>
    %c0_5 = arith.constant 0 : index
    %c0_6 = arith.constant 0 : index
    %c0_7 = arith.constant 0 : index
    %4 = vector.load %arg2[%c0_5, %c0_6, %c0_7] : memref<2x8x32xf32, #tpu.memory_space<vmem>>, vector<2x8x32xf32>
    %5 = vector.shape_cast %4 : vector<2x8x32xf32> to vector<16x32xf32>
    %c0_8 = arith.constant 0 : index
    %c0_9 = arith.constant 0 : index
    %c0_10 = arith.constant 0 : index
    %6 = vector.load %arg3[%c0_8, %c0_9, %c0_10] : memref<4x32x32xf32, #tpu.memory_space<vmem>>, vector<1x32x32xf32>
    %7 = vector.shape_cast %6 : vector<1x32x32xf32> to vector<32x32xf32>
    %cst = arith.constant dense<0.000000e+00> : vector<16x32xf32>
    %8 = tpu.matmul %1, %7, %cst {dimension_numbers = #tpu.dot_dimension_numbers<[1], [0], [0], [1], [0, 0, 1, 1], [], []>} : vector<16x32xf32>, vector<32x32xf32>, vector<16x32xf32> -> vector<16x32xf32>
    %c0_11 = arith.constant 0 : index
    %c0_12 = arith.constant 0 : index
    %c0_13 = arith.constant 0 : index
    %9 = vector.load %arg4[%c0_11, %c0_12, %c0_13] : memref<4x1x32xf32, #tpu.memory_space<vmem>>, vector<1x1x32xf32>
    %10 = vector.shape_cast %9 : vector<1x1x32xf32> to vector<1x32xf32>
    %11 = vector.broadcast %10 : vector<1x32xf32> to vector<16x32xf32>
    %12 = arith.addf %8, %11 : vector<16x32xf32>
    %cst_14 = arith.constant 0.353553385 : f32
    %13 = vector.broadcast %cst_14 : f32 to vector<16x32xf32>
    %14 = arith.mulf %12, %13 : vector<16x32xf32>
    %c1 = arith.constant 1 : index
    %c0_15 = arith.constant 0 : index
    %c0_16 = arith.constant 0 : index
    %15 = vector.load %arg3[%c1, %c0_15, %c0_16] : memref<4x32x32xf32, #tpu.memory_space<vmem>>, vector<1x32x32xf32>
    %16 = vector.shape_cast %15 : vector<1x32x32xf32> to vector<32x32xf32>
    %cst_17 = arith.constant dense<0.000000e+00> : vector<16x32xf32>
    %17 = tpu.matmul %3, %16, %cst_17 {dimension_numbers = #tpu.dot_dimension_numbers<[1], [0], [0], [1], [0, 0, 1, 1], [], []>} : vector<16x32xf32>, vector<32x32xf32>, vector<16x32xf32> -> vector<16x32xf32>
    %c1_18 = arith.constant 1 : index
    %c0_19 = arith.constant 0 : index
    %c0_20 = arith.constant 0 : index
    %18 = vector.load %arg4[%c1_18, %c0_19, %c0_20] : memref<4x1x32xf32, #tpu.memory_space<vmem>>, vector<1x1x32xf32>
    %19 = vector.shape_cast %18 : vector<1x1x32xf32> to vector<1x32xf32>
    %20 = vector.broadcast %19 : vector<1x32xf32> to vector<16x32xf32>
    %21 = arith.addf %17, %20 : vector<16x32xf32>
    %c2 = arith.constant 2 : index
    %c0_21 = arith.constant 0 : index
    %c0_22 = arith.constant 0 : index
    %22 = vector.load %arg3[%c2, %c0_21, %c0_22] : memref<4x32x32xf32, #tpu.memory_space<vmem>>, vector<1x32x32xf32>
    %23 = vector.shape_cast %22 : vector<1x32x32xf32> to vector<32x32xf32>
    %cst_23 = arith.constant dense<0.000000e+00> : vector<16x32xf32>
    %24 = tpu.matmul %5, %23, %cst_23 {dimension_numbers = #tpu.dot_dimension_numbers<[1], [0], [0], [1], [0, 0, 1, 1], [], []>} : vector<16x32xf32>, vector<32x32xf32>, vector<16x32xf32> -> vector<16x32xf32>
    %c2_24 = arith.constant 2 : index
    %c0_25 = arith.constant 0 : index
    %c0_26 = arith.constant 0 : index
    %25 = vector.load %arg4[%c2_24, %c0_25, %c0_26] : memref<4x1x32xf32, #tpu.memory_space<vmem>>, vector<1x1x32xf32>
    %26 = vector.shape_cast %25 : vector<1x1x32xf32> to vector<1x32xf32>
    %27 = vector.broadcast %26 : vector<1x32xf32> to vector<16x32xf32>
    %28 = arith.addf %24, %27 : vector<16x32xf32>
    %29 = vector.extract_strided_slice %14 {offsets = [0, 0], sizes = [16, 8], strides = [1, 1]} : vector<16x32xf32> to vector<16x8xf32>
    %30 = vector.shape_cast %29 : vector<16x8xf32> to vector<2x8x8xf32>
    %31 = vector.extract_strided_slice %14 {offsets = [0, 8], sizes = [16, 8], strides = [1, 1]} : vector<16x32xf32> to vector<16x8xf32>
    %32 = vector.shape_cast %31 : vector<16x8xf32> to vector<2x8x8xf32>
    %33 = vector.extract_strided_slice %14 {offsets = [0, 16], sizes = [16, 8], strides = [1, 1]} : vector<16x32xf32> to vector<16x8xf32>
    %34 = vector.shape_cast %33 : vector<16x8xf32> to vector<2x8x8xf32>
    %35 = vector.extract_strided_slice %14 {offsets = [0, 24], sizes = [16, 8], strides = [1, 1]} : vector<16x32xf32> to vector<16x8xf32>
    %36 = vector.shape_cast %35 : vector<16x8xf32> to vector<2x8x8xf32>
    %37 = vector.shape_cast %30 : vector<2x8x8xf32> to vector<1x2x8x8xf32>
    %38 = vector.shape_cast %32 : vector<2x8x8xf32> to vector<1x2x8x8xf32>
    %39 = vector.shape_cast %34 : vector<2x8x8xf32> to vector<1x2x8x8xf32>
    %40 = vector.shape_cast %36 : vector<2x8x8xf32> to vector<1x2x8x8xf32>
    %41 = tpu.concatenate %37, %38, %39, %40 in 0 : vector<1x2x8x8xf32>, vector<1x2x8x8xf32>, vector<1x2x8x8xf32>, vector<1x2x8x8xf32> -> vector<4x2x8x8xf32>
    %42 = vector.shape_cast %41 : vector<4x2x8x8xf32> to vector<8x8x8xf32>
    %43 = vector.extract_strided_slice %21 {offsets = [0, 0], sizes = [16, 8], strides = [1, 1]} : vector<16x32xf32> to vector<16x8xf32>
    %44 = vector.shape_cast %43 : vector<16x8xf32> to vector<2x8x8xf32>
    %45 = vector.extract_strided_slice %21 {offsets = [0, 8], sizes = [16, 8], strides = [1, 1]} : vector<16x32xf32> to vector<16x8xf32>
    %46 = vector.shape_cast %45 : vector<16x8xf32> to vector<2x8x8xf32>
    %47 = vector.extract_strided_slice %21 {offsets = [0, 16], sizes = [16, 8], strides = [1, 1]} : vector<16x32xf32> to vector<16x8xf32>
    %48 = vector.shape_cast %47 : vector<16x8xf32> to vector<2x8x8xf32>
    %49 = vector.extract_strided_slice %21 {offsets = [0, 24], sizes = [16, 8], strides = [1, 1]} : vector<16x32xf32> to vector<16x8xf32>
    %50 = vector.shape_cast %49 : vector<16x8xf32> to vector<2x8x8xf32>
    %51 = vector.shape_cast %44 : vector<2x8x8xf32> to vector<1x2x8x8xf32>
    %52 = vector.shape_cast %46 : vector<2x8x8xf32> to vector<1x2x8x8xf32>
    %53 = vector.shape_cast %48 : vector<2x8x8xf32> to vector<1x2x8x8xf32>
    %54 = vector.shape_cast %50 : vector<2x8x8xf32> to vector<1x2x8x8xf32>
    %55 = tpu.concatenate %51, %52, %53, %54 in 0 : vector<1x2x8x8xf32>, vector<1x2x8x8xf32>, vector<1x2x8x8xf32>, vector<1x2x8x8xf32> -> vector<4x2x8x8xf32>
    %56 = vector.shape_cast %55 : vector<4x2x8x8xf32> to vector<8x8x8xf32>
    %57 = vector.extract_strided_slice %28 {offsets = [0, 0], sizes = [16, 8], strides = [1, 1]} : vector<16x32xf32> to vector<16x8xf32>
    %58 = vector.shape_cast %57 : vector<16x8xf32> to vector<2x8x8xf32>
    %59 = vector.extract_strided_slice %28 {offsets = [0, 8], sizes = [16, 8], strides = [1, 1]} : vector<16x32xf32> to vector<16x8xf32>
    %60 = vector.shape_cast %59 : vector<16x8xf32> to vector<2x8x8xf32>
    %61 = vector.extract_strided_slice %28 {offsets = [0, 16], sizes = [16, 8], strides = [1, 1]} : vector<16x32xf32> to vector<16x8xf32>
    %62 = vector.shape_cast %61 : vector<16x8xf32> to vector<2x8x8xf32>
    %63 = vector.extract_strided_slice %28 {offsets = [0, 24], sizes = [16, 8], strides = [1, 1]} : vector<16x32xf32> to vector<16x8xf32>
    %64 = vector.shape_cast %63 : vector<16x8xf32> to vector<2x8x8xf32>
    %65 = vector.shape_cast %58 : vector<2x8x8xf32> to vector<1x2x8x8xf32>
    %66 = vector.shape_cast %60 : vector<2x8x8xf32> to vector<1x2x8x8xf32>
    %67 = vector.shape_cast %62 : vector<2x8x8xf32> to vector<1x2x8x8xf32>
    %68 = vector.shape_cast %64 : vector<2x8x8xf32> to vector<1x2x8x8xf32>
    %69 = tpu.concatenate %65, %66, %67, %68 in 0 : vector<1x2x8x8xf32>, vector<1x2x8x8xf32>, vector<1x2x8x8xf32>, vector<1x2x8x8xf32> -> vector<4x2x8x8xf32>
    %70 = vector.shape_cast %69 : vector<4x2x8x8xf32> to vector<8x8x8xf32>
    "tpu.trace_start"() <{level = 10 : i32, message = "gqd,gkd->gqk"}> : () -> ()
    %cst_27 = arith.constant dense<0.000000e+00> : vector<8x8x8xf32>
    %71 = tpu.matmul %42, %56, %cst_27 {dimension_numbers = #tpu.dot_dimension_numbers<[2], [2], [1], [1], [0, 0, 0, 1, 1, 1], [0], [0]>} : vector<8x8x8xf32>, vector<8x8x8xf32>, vector<8x8x8xf32> -> vector<8x8x8xf32>
    "tpu.trace_stop"() : () -> ()
    %cst_28 = arith.constant dense<0xFF800000> : vector<8x8xf32>
    %72 = vector.multi_reduction <maximumf>, %71, %cst_28 [2] : vector<8x8x8xf32> to vector<8x8xf32>
    %73 = vector.shape_cast %72 : vector<8x8xf32> to vector<8x8x1xf32>
    %74 = vector.broadcast %73 : vector<8x8x1xf32> to vector<8x8x8xf32>
    %75 = arith.subf %71, %74 : vector<8x8x8xf32>
    %76 = math.exp %75 : vector<8x8x8xf32>
    %cst_29 = arith.constant dense<0.000000e+00> : vector<8x8xf32>
    %77 = vector.multi_reduction <add>, %76, %cst_29 [2] : vector<8x8x8xf32> to vector<8x8xf32>
    %78 = vector.shape_cast %77 : vector<8x8xf32> to vector<8x8x1xf32>
    %79 = tpu.reciprocal %78 : vector<8x8x1xf32> -> vector<8x8x1xf32>
    %80 = vector.broadcast %79 : vector<8x8x1xf32> to vector<8x8x8xf32>
    %81 = arith.mulf %76, %80 : vector<8x8x8xf32>
    "tpu.trace_start"() <{level = 10 : i32, message = "gqk,gkd->gqd"}> : () -> ()
    %cst_30 = arith.constant dense<0.000000e+00> : vector<8x8x8xf32>
    %82 = tpu.matmul %81, %70, %cst_30 {dimension_numbers = #tpu.dot_dimension_numbers<[2], [1], [1], [2], [0, 0, 0, 1, 1, 2], [0], [0]>} : vector<8x8x8xf32>, vector<8x8x8xf32>, vector<8x8x8xf32> -> vector<8x8x8xf32>
    "tpu.trace_stop"() : () -> ()
    %83 = vector.shape_cast %82 : vector<8x8x8xf32> to vector<4x2x8x8xf32>
    %84 = vector.extract_strided_slice %83 {offsets = [0, 0, 0, 0], sizes = [1, 2, 8, 8], strides = [1, 1, 1, 1]} : vector<4x2x8x8xf32> to vector<1x2x8x8xf32>
    %85 = vector.shape_cast %84 : vector<1x2x8x8xf32> to vector<2x8x8xf32>
    %86 = vector.extract_strided_slice %83 {offsets = [1, 0, 0, 0], sizes = [1, 2, 8, 8], strides = [1, 1, 1, 1]} : vector<4x2x8x8xf32> to vector<1x2x8x8xf32>
    %87 = vector.shape_cast %86 : vector<1x2x8x8xf32> to vector<2x8x8xf32>
    %88 = vector.extract_strided_slice %83 {offsets = [2, 0, 0, 0], sizes = [1, 2, 8, 8], strides = [1, 1, 1, 1]} : vector<4x2x8x8xf32> to vector<1x2x8x8xf32>
    %89 = vector.shape_cast %88 : vector<1x2x8x8xf32> to vector<2x8x8xf32>
    %90 = vector.extract_strided_slice %83 {offsets = [3, 0, 0, 0], sizes = [1, 2, 8, 8], strides = [1, 1, 1, 1]} : vector<4x2x8x8xf32> to vector<1x2x8x8xf32>
    %91 = vector.shape_cast %90 : vector<1x2x8x8xf32> to vector<2x8x8xf32>
    %92 = tpu.concatenate %85, %87, %89, %91 in 2 : vector<2x8x8xf32>, vector<2x8x8xf32>, vector<2x8x8xf32>, vector<2x8x8xf32> -> vector<2x8x32xf32>
    %93 = vector.shape_cast %92 : vector<2x8x32xf32> to vector<16x32xf32>
    %c3 = arith.constant 3 : index
    %c0_31 = arith.constant 0 : index
    %c0_32 = arith.constant 0 : index
    %94 = vector.load %arg3[%c3, %c0_31, %c0_32] : memref<4x32x32xf32, #tpu.memory_space<vmem>>, vector<1x32x32xf32>
    %95 = vector.shape_cast %94 : vector<1x32x32xf32> to vector<32x32xf32>
    %cst_33 = arith.constant dense<0.000000e+00> : vector<16x32xf32>
    %96 = tpu.matmul %93, %95, %cst_33 {dimension_numbers = #tpu.dot_dimension_numbers<[1], [0], [0], [1], [0, 0, 1, 1], [], []>} : vector<16x32xf32>, vector<32x32xf32>, vector<16x32xf32> -> vector<16x32xf32>
    %c3_34 = arith.constant 3 : index
    %c0_35 = arith.constant 0 : index
    %c0_36 = arith.constant 0 : index
    %97 = vector.load %arg4[%c3_34, %c0_35, %c0_36] : memref<4x1x32xf32, #tpu.memory_space<vmem>>, vector<1x1x32xf32>
    %98 = vector.shape_cast %97 : vector<1x1x32xf32> to vector<1x32xf32>
    %99 = vector.broadcast %98 : vector<1x32xf32> to vector<16x32xf32>
    %100 = arith.addf %96, %99 : vector<16x32xf32>
    %101 = vector.shape_cast %100 : vector<16x32xf32> to vector<2x8x32xf32>
    %c0_37 = arith.constant 0 : index
    %c0_38 = arith.constant 0 : index
    %c0_39 = arith.constant 0 : index
    %102 = vector.load %arg5[%c0_37, %c0_38, %c0_39] : memref<2x8x32xf32, #tpu.memory_space<vmem>>, vector<2x8x32xf32>
    tpu.vector_store %arg5[%c0_37, %c0_38, %c0_39], %101 {strides = array<i32>} : memref<2x8x32xf32, #tpu.memory_space<vmem>>, vector<2x8x32xf32>,
    return
  }
}

</mosaic_0001>

<llo_original>
// kernel: tpu_custom_call.1
$region0: #{tpu_custom_call.1}
  #allocation0 [shape = 'u32[]', space=smem, size = 0x4, offset = 0x4, fixed_abs, tag = 'smem constant byte address 0x4 - core index']
  #allocation1 [shape = 'u32[144,128]{1,0:T(1,128)}', space=vmem, size = 0x12000, scoped, tag = 'internal scratch']
  %s0 = inlined_call_operand.hbm [shape: f32[2,8,32], index: 0, kind: input, shape index: {}]
  %s1 = inlined_call_operand.hbm [shape: f32[2,8,32], index: 1, kind: input, shape index: {}]
  %s2 = inlined_call_operand.hbm [shape: f32[2,8,32], index: 2, kind: input, shape index: {}]
  %s3 = inlined_call_operand.hbm [shape: f32[4,32,32], index: 3, kind: input, shape index: {}]
  %s4 = inlined_call_operand.vmem [shape: f32[4,1,32], index: 4, kind: input, shape index: {}]
  %s5 = inlined_call_operand.hbm [shape: f32[2,8,32], index: 5, kind: output, shape index: {}]
  %s6 = sld [smem:[#allocation0]]
  $region46: #{tpu_custom_call.1} parent=0
    _
  %s8 = ssub.s32 1, %s6
  %s9 = scalar_select 0, %s8, %s6
  $region1: #{tpu_custom_call.1} parent=0
    #allocation2 [shape = 'u8[8192]{0}', space=vmem, size = 0x2000, scoped, tag = 'input window, operand 0, single buffered']
    #allocation3 [shape = 's32[1]{0}', space=sflag, size = 0x4, scoped, tag = 'scoped memory for tpu_custom_call.1']
    #allocation4 [shape = 's32[1]{0}', space=sflag, size = 0x4, scoped, tag = 'scoped memory for tpu_custom_call.1']
    #allocation5 [shape = 'u8[8192]{0}', space=vmem, size = 0x2000, scoped, tag = 'input window, operand 1, single buffered']
    #allocation6 [shape = 's32[1]{0}', space=sflag, size = 0x4, scoped, tag = 'scoped memory for tpu_custom_call.1']
    #allocation7 [shape = 'u8[8192]{0}', space=vmem, size = 0x2000, scoped, tag = 'input window, operand 2, single buffered']
    #allocation8 [shape = 'u8[65536]{0}', space=vmem, size = 0x10000, scoped, tag = 'input window, operand 3, single buffered']
    #allocation9 [shape = 's32[1]{0}', space=sflag, size = 0x4, scoped, tag = 'scoped memory for tpu_custom_call.1']
    #allocation10 [shape = 'u8[8192]{0}', space=vmem, size = 0x2000, scoped, tag = 'output window, operand 0, single buffered']
    %10 = vsyncpa [#allocation3], 0
    %11 = vsyncpa [#allocation6], 0
    %12 = vsyncpa [#allocation9], 0
    %13 = vsyncpa [#allocation4], 0
    // Predicated region
    $region2: #{tpu_custom_call.1} parent=1 // pred_check
      _
    $region3: #{tpu_custom_call.1} parent=1 // pred_check_branch
      %15 = sbr.rel (0) target = $region5
    $region4: #{tpu_custom_call.1} parent=1 // pred_region
      %s17 = ssub.s32 256, 256
      %18 = vsyncadd [#allocation3], %s17
      %s19 = sshll.u32 [#allocation2], 4
      %s20 = int_to_ptr.vmem [resolvable:$true] %s19
      %25 = dma.hbm_to_vmem [thread:$0]  %s0, 256, %s20, [#allocation3], 128, 128, 8
    $region5: #{tpu_custom_call.1} parent=1 // pred_fallthru
      _
    // Predicated region
    $region6: #{tpu_custom_call.1} parent=1 // pred_check
      _
    $region7: #{tpu_custom_call.1} parent=1 // pred_check_branch
      %27 = sbr.rel (0) target = $region9
    $region8: #{tpu_custom_call.1} parent=1 // pred_region
      %s29 = ssub.s32 256, 256
      %30 = vsyncadd [#allocation6], %s29
      %s31 = sshll.u32 [#allocation5], 4
      %s32 = int_to_ptr.vmem [resolvable:$true] %s31
      %37 = dma.hbm_to_vmem [thread:$0]  %s1, 256, %s32, [#allocation6], 128, 128, 8
    $region9: #{tpu_custom_call.1} parent=1 // pred_fallthru
      _
    // Predicated region
    $region10: #{tpu_custom_call.1} parent=1 // pred_check
      _
    $region11: #{tpu_custom_call.1} parent=1 // pred_check_branch
      %39 = sbr.rel (0) target = $region13
    $region12: #{tpu_custom_call.1} parent=1 // pred_region
      %s41 = ssub.s32 256, 256
      %42 = vsyncadd [#allocation6], %s41
      %s43 = sshll.u32 [#allocation7], 4
      %s44 = int_to_ptr.vmem [resolvable:$true] %s43
      %49 = dma.hbm_to_vmem [thread:$0]  %s2, 256, %s44, [#allocation6], 128, 128, 8
    $region13: #{tpu_custom_call.1} parent=1 // pred_fallthru
      _
    // Predicated region
    $region14: #{tpu_custom_call.1} parent=1 // pred_check
      _
    $region15: #{tpu_custom_call.1} parent=1 // pred_check_branch
      %51 = sbr.rel (0) target = $region17
    $region16: #{tpu_custom_call.1} parent=1 // pred_region
      %s53 = ssub.s32 2048, 2048
      %54 = vsyncadd [#allocation9], %s53
      %s55 = sshll.u32 [#allocation8], 4
      %s56 = int_to_ptr.vmem [resolvable:$true] %s55
      %61 = dma.hbm_to_vmem [thread:$0]  %s3, 2048, %s56, [#allocation9], 128, 128, 8
    $region17: #{tpu_custom_call.1} parent=1 // pred_fallthru
      _
    // Predicated region
    $region18: #{tpu_custom_call.1} parent=1 // pred_check
      _
    $region19: #{tpu_custom_call.1} parent=1 // pred_check_branch
      %63 = sbr.rel (0) target = $region21
    $region20: #{tpu_custom_call.1} parent=1 // pred_region
      _
    $region21: #{tpu_custom_call.1} parent=1 // pred_fallthru
      _
    // Predicated region
    $region22: #{tpu_custom_call.1} parent=1 // pred_check
      _
    $region23: #{tpu_custom_call.1} parent=1 // pred_check_branch
      %65 = sbr.rel (0) target = $region25
    $region24: #{tpu_custom_call.1} parent=1 // pred_region
      %66 = dma.done [#allocation3], 256
    $region25: #{tpu_custom_call.1} parent=1 // pred_fallthru
      _
    // Predicated region
    $region26: #{tpu_custom_call.1} parent=1 // pred_check
      _
    $region27: #{tpu_custom_call.1} parent=1 // pred_check_branch
      %68 = sbr.rel (0) target = $region29
    $region28: #{tpu_custom_call.1} parent=1 // pred_region
      %69 = dma.done [#allocation6], 256
    $region29: #{tpu_custom_call.1} parent=1 // pred_fallthru
      _
    // Predicated region
    $region30: #{tpu_custom_call.1} parent=1 // pred_check
      _
    $region31: #{tpu_custom_call.1} parent=1 // pred_check_branch
      %71 = sbr.rel (0) target = $region33
    $region32: #{tpu_custom_call.1} parent=1 // pred_region
      %72 = dma.done [#allocation6], 256
    $region33: #{tpu_custom_call.1} parent=1 // pred_fallthru
      _
    // Predicated region
    $region34: #{tpu_custom_call.1} parent=1 // pred_check
      _
    $region35: #{tpu_custom_call.1} parent=1 // pred_check_branch
      %74 = sbr.rel (0) target = $region37
    $region36: #{tpu_custom_call.1} parent=1 // pred_region
      %75 = dma.done [#allocation9], 2048
    $region37: #{tpu_custom_call.1} parent=1 // pred_fallthru
      _
    %v76 = vld [vmem:[#allocation2] sm:$0xff]
    %v77 = vld [vmem:[#allocation2 + $0x8] sm:$0xff]
    %v78 = vld [vmem:[#allocation5] sm:$0xff]
    %v79 = vld [vmem:[#allocation5 + $0x8] sm:$0xff]
    %v80 = vld [vmem:[#allocation7] sm:$0xff]
    %v81 = vld [vmem:[#allocation7 + $0x8] sm:$0xff]
    %v82 = vld [vmem:[#allocation8] sm:$0xff]
    %v83 = vld [vmem:[#allocation8 + $0x8] sm:$0xff]
    %v84 = vld [vmem:[#allocation8 + $0x10] sm:$0xff]
    %v85 = vld [vmem:[#allocation8 + $0x18] sm:$0xff]
    %v86 = vld [vmem:[%s4] sm:$0x1]
    %v88 = vlaneseq
    %v89 = vshrl.u32 %v88, 7
    %v90 = vsub.s32 0, %v89
    %v91 = vrot.slane %v86, %v90
    %vm93 = vcmask 261120
    %v95 = vsel %vm93, %v76, 0
    %v98 = vsel %vm93, %v77, 0
    %100 = vmatprep.subr.mxu0 0.0
    %101 = vmatpush1.msra.mxu0 0.0
    %102 = vmatprep.subr.mxu0 0.0
    %103 = vmatpush1.msra.mxu0 0.0
    %104 = vmatprep.subr.mxu0 0.0
    %105 = vmatpush1.msra.mxu0 0.0
    %106 = vmatprep.subr.mxu0 0.0
    %107 = vmatpush1.msra.mxu0 0.0
    %108 = vmatprep.subr.mxu0 0.0
    %109 = vmatpush1.msra.mxu0 0.0
    %110 = vmatprep.subr.mxu0 0.0
    %111 = vmatpush1.msra.mxu0 0.0
    %112 = vmatprep.subr.mxu0 0.0
    %113 = vmatpush1.msra.mxu0 0.0
    %114 = vmatprep.subr.mxu0 0.0
    %115 = vmatpush1.msra.mxu0 0.0
    %116 = vmatprep.subr.mxu0 0.0
    %117 = vmatpush1.msra.mxu0 0.0
    %118 = vmatprep.subr.mxu0 0.0
    %119 = vmatpush1.msra.mxu0 0.0
    %120 = vmatprep.subr.mxu0 0.0
    %121 = vmatpush1.msra.mxu0 0.0
    %122 = vmatprep.subr.mxu0 0.0
    %123 = vmatpush1.msra.mxu0 0.0
    %124 = vmatprep.subr.mxu0 0.0
    %125 = vmatpush1.msra.mxu0 %v85
    %126 = vmatprep.subr.mxu0 0.0
    %127 = vmatpush1.msra.mxu0 %v84
    %128 = vmatprep.subr.mxu0 0.0
    %129 = vmatpush1.msra.mxu0 %v83
    %130 = vmatprep.subr.mxu0 0.0
    %131 = vmatpush1.msra.mxu0 %v82
    %132 = vmatprep.subr.mxu0 0.0
    %133 = vmatpush2.msra.mxu0 0.0
    %134 = vmatprep.subr.mxu0 0.0
    %135 = vmatpush2.msra.mxu0 0.0
    %136 = vmatprep.subr.mxu0 0.0
    %137 = vmatpush2.msra.mxu0 0.0
    %138 = vmatprep.subr.mxu0 0.0
    %139 = vmatpush2.msra.mxu0 0.0
    %140 = vmatprep.subr.mxu0 0.0
    %141 = vmatpush2.msra.mxu0 0.0
    %142 = vmatprep.subr.mxu0 0.0
    %143 = vmatpush2.msra.mxu0 0.0
    %144 = vmatprep.subr.mxu0 0.0
    %145 = vmatpush2.msra.mxu0 0.0
    %146 = vmatprep.subr.mxu0 0.0
    %147 = vmatpush2.msra.mxu0 0.0
    %148 = vmatprep.subr.mxu0 0.0
    %149 = vmatpush2.msra.mxu0 0.0
    %150 = vmatprep.subr.mxu0 0.0
    %151 = vmatpush2.msra.mxu0 0.0
    %152 = vmatprep.subr.mxu0 0.0
    %153 = vmatpush2.msra.mxu0 0.0
    %154 = vmatprep.subr.mxu0 0.0
    %155 = vmatpush2.msra.mxu0 0.0
    %156 = vmatprep.subr.mxu0 0.0
    %157 = vmatpush2.msra.mxu0 0.0
    %158 = vmatprep.subr.mxu0 0.0
    %159 = vmatpush2.msra.mxu0 0.0
    %160 = vmatprep.subr.mxu0 0.0
    %161 = vmatpush2.msra.mxu0 0.0
    %162 = vmatprep.subr.mxu0 0.0
    %163 = vmatpush2.msra.mxu0 0.0
    %164 = vmatprep.mubr.f32.mxu0 0.0
    %165 = vmatmul.mubr.f32.gmra.mxu0 %v95
    %v166 = vpop.f32.mrf.mxu0
    %v167 = vadd.f32 %v91, %v166
    %v168 = vpop.f32.mrf.mxu0
    %169 = vmatprep.mubr.f32.mxu0 0.0
    %170 = vmatmul.mubr.f32.gmra.mxu0 %v98
    %v171 = vpop.f32.mrf.mxu0
    %v172 = vadd.f32 %v91, %v171
    %v173 = vpop.f32.mrf.mxu0
    %174 = vdwg.mxu0
    %v175 = vmul.f32 %v167, 0.35355338
    %v176 = vmul.f32 %v172, 0.35355338
    %s177 = scalar_lea.vmem [#allocation8], 32
    %v178 = vld [vmem:[%s177] sm:$0xff]
    %v179 = vld [vmem:[%s177 + $0x8] sm:$0xff]
    %v180 = vld [vmem:[%s177 + $0x10] sm:$0xff]
    %v181 = vld [vmem:[%s177 + $0x18] sm:$0xff]
    %s182 = scalar_lea.vmem %s4, 1
    %v183 = vld [vmem:[%s182] sm:$0x1]
    %v185 = vlaneseq
    %v186 = vshrl.u32 %v185, 7
    %v187 = vsub.s32 0, %v186
    %v188 = vrot.slane %v183, %v187
    %v191 = vsel %vm93, %v78, 0
    %v194 = vsel %vm93, %v79, 0
    %196 = vmatprep.subr.mxu0 0.0
    %197 = vmatpush1.msra.mxu0 0.0
    %198 = vmatprep.subr.mxu0 0.0
    %199 = vmatpush1.msra.mxu0 0.0
    %200 = vmatprep.subr.mxu0 0.0
    %201 = vmatpush1.msra.mxu0 0.0
    %202 = vmatprep.subr.mxu0 0.0
    %203 = vmatpush1.msra.mxu0 0.0
    %204 = vmatprep.subr.mxu0 0.0
    %205 = vmatpush1.msra.mxu0 0.0
    %206 = vmatprep.subr.mxu0 0.0
    %207 = vmatpush1.msra.mxu0 0.0
    %208 = vmatprep.subr.mxu0 0.0
    %209 = vmatpush1.msra.mxu0 0.0
    %210 = vmatprep.subr.mxu0 0.0
    %211 = vmatpush1.msra.mxu0 0.0
    %212 = vmatprep.subr.mxu0 0.0
    %213 = vmatpush1.msra.mxu0 0.0
    %214 = vmatprep.subr.mxu0 0.0
    %215 = vmatpush1.msra.mxu0 0.0
    %216 = vmatprep.subr.mxu0 0.0
    %217 = vmatpush1.msra.mxu0 0.0
    %218 = vmatprep.subr.mxu0 0.0
    %219 = vmatpush1.msra.mxu0 0.0
    %220 = vmatprep.subr.mxu0 0.0
    %221 = vmatpush1.msra.mxu0 %v181
    %222 = vmatprep.subr.mxu0 0.0
    %223 = vmatpush1.msra.mxu0 %v180
    %224 = vmatprep.subr.mxu0 0.0
    %225 = vmatpush1.msra.mxu0 %v179
    %226 = vmatprep.subr.mxu0 0.0
    %227 = vmatpush1.msra.mxu0 %v178
    %228 = vmatprep.subr.mxu0 0.0
    %229 = vmatpush2.msra.mxu0 0.0
    %230 = vmatprep.subr.mxu0 0.0
    %231 = vmatpush2.msra.mxu0 0.0
    %232 = vmatprep.subr.mxu0 0.0
    %233 = vmatpush2.msra.mxu0 0.0
    %234 = vmatprep.subr.mxu0 0.0
    %235 = vmatpush2.msra.mxu0 0.0
    %236 = vmatprep.subr.mxu0 0.0
    %237 = vmatpush2.msra.mxu0 0.0
    %238 = vmatprep.subr.mxu0 0.0
    %239 = vmatpush2.msra.mxu0 0.0
    %240 = vmatprep.subr.mxu0 0.0
    %241 = vmatpush2.msra.mxu0 0.0
    %242 = vmatprep.subr.mxu0 0.0
    %243 = vmatpush2.msra.mxu0 0.0
    %244 = vmatprep.subr.mxu0 0.0
    %245 = vmatpush2.msra.mxu0 0.0
    %246 = vmatprep.subr.mxu0 0.0
    %247 = vmatpush2.msra.mxu0 0.0
    %248 = vmatprep.subr.mxu0 0.0
    %249 = vmatpush2.msra.mxu0 0.0
    %250 = vmatprep.subr.mxu0 0.0
    %251 = vmatpush2.msra.mxu0 0.0
    %252 = vmatprep.subr.mxu0 0.0
    %253 = vmatpush2.msra.mxu0 0.0
    %254 = vmatprep.subr.mxu0 0.0
    %255 = vmatpush2.msra.mxu0 0.0
    %256 = vmatprep.subr.mxu0 0.0
    %257 = vmatpush2.msra.mxu0 0.0
    %258 = vmatprep.subr.mxu0 0.0
    %259 = vmatpush2.msra.mxu0 0.0
    %260 = vmatprep.mubr.f32.mxu0 0.0
    %261 = vmatmul.mubr.f32.gmra.mxu0 %v191
    %v262 = vpop.f32.mrf.mxu0
    %v263 = vadd.f32 %v188, %v262
    %v264 = vpop.f32.mrf.mxu0
    %265 = vmatprep.mubr.f32.mxu0 0.0
    %266 = vmatmul.mubr.f32.gmra.mxu0 %v194
    %v267 = vpop.f32.mrf.mxu0
    %v268 = vadd.f32 %v188, %v267
    %v269 = vpop.f32.mrf.mxu0
    %270 = vdwg.mxu0
    %s271 = scalar_lea.vmem [#allocation8], 64
    %v272 = vld [vmem:[%s271] sm:$0xff]
    %v273 = vld [vmem:[%s271 + $0x8] sm:$0xff]
    %v274 = vld [vmem:[%s271 + $0x10] sm:$0xff]
    %v275 = vld [vmem:[%s271 + $0x18] sm:$0xff]
    %s276 = scalar_lea.vmem %s4, 2
    %v277 = vld [vmem:[%s276] sm:$0x1]
    %v279 = vlaneseq
    %v280 = vshrl.u32 %v279, 7
    %v281 = vsub.s32 0, %v280
    %v282 = vrot.slane %v277, %v281
    %v285 = vsel %vm93, %v80, 0
    %v288 = vsel %vm93, %v81, 0
    %290 = vmatprep.subr.mxu0 0.0
    %291 = vmatpush1.msra.mxu0 0.0
    %292 = vmatprep.subr.mxu0 0.0
    %293 = vmatpush1.msra.mxu0 0.0
    %294 = vmatprep.subr.mxu0 0.0
    %295 = vmatpush1.msra.mxu0 0.0
    %296 = vmatprep.subr.mxu0 0.0
    %297 = vmatpush1.msra.mxu0 0.0
    %298 = vmatprep.subr.mxu0 0.0
    %299 = vmatpush1.msra.mxu0 0.0
    %300 = vmatprep.subr.mxu0 0.0
    %301 = vmatpush1.msra.mxu0 0.0
    %302 = vmatprep.subr.mxu0 0.0
    %303 = vmatpush1.msra.mxu0 0.0
    %304 = vmatprep.subr.mxu0 0.0
    %305 = vmatpush1.msra.mxu0 0.0
    %306 = vmatprep.subr.mxu0 0.0
    %307 = vmatpush1.msra.mxu0 0.0
    %308 = vmatprep.subr.mxu0 0.0
    %309 = vmatpush1.msra.mxu0 0.0
    %310 = vmatprep.subr.mxu0 0.0
    %311 = vmatpush1.msra.mxu0 0.0
    %312 = vmatprep.subr.mxu0 0.0
    %313 = vmatpush1.msra.mxu0 0.0
    %314 = vmatprep.subr.mxu0 0.0
    %315 = vmatpush1.msra.mxu0 %v275
    %316 = vmatprep.subr.mxu0 0.0
    %317 = vmatpush1.msra.mxu0 %v274
    %318 = vmatprep.subr.mxu0 0.0
    %319 = vmatpush1.msra.mxu0 %v273
    %320 = vmatprep.subr.mxu0 0.0
    %321 = vmatpush1.msra.mxu0 %v272
    %322 = vmatprep.subr.mxu0 0.0
    %323 = vmatpush2.msra.mxu0 0.0
    %324 = vmatprep.subr.mxu0 0.0
    %325 = vmatpush2.msra.mxu0 0.0
    %326 = vmatprep.subr.mxu0 0.0
    %327 = vmatpush2.msra.mxu0 0.0
    %328 = vmatprep.subr.mxu0 0.0
    %329 = vmatpush2.msra.mxu0 0.0
    %330 = vmatprep.subr.mxu0 0.0
    %331 = vmatpush2.msra.mxu0 0.0
    %332 = vmatprep.subr.mxu0 0.0
    %333 = vmatpush2.msra.mxu0 0.0
    %334 = vmatprep.subr.mxu0 0.0
    %335 = vmatpush2.msra.mxu0 0.0
    %336 = vmatprep.subr.mxu0 0.0
    %337 = vmatpush2.msra.mxu0 0.0
    %338 = vmatprep.subr.mxu0 0.0
    %339 = vmatpush2.msra.mxu0 0.0
    %340 = vmatprep.subr.mxu0 0.0
    %341 = vmatpush2.msra.mxu0 0.0
    %342 = vmatprep.subr.mxu0 0.0
    %343 = vmatpush2.msra.mxu0 0.0
    %344 = vmatprep.subr.mxu0 0.0
    %345 = vmatpush2.msra.mxu0 0.0
    %346 = vmatprep.subr.mxu0 0.0
    %347 = vmatpush2.msra.mxu0 0.0
    %348 = vmatprep.subr.mxu0 0.0
    %349 = vmatpush2.msra.mxu0 0.0
    %350 = vmatprep.subr.mxu0 0.0
    %351 = vmatpush2.msra.mxu0 0.0
    %352 = vmatprep.subr.mxu0 0.0
    %353 = vmatpush2.msra.mxu0 0.0
    %354 = vmatprep.mubr.f32.mxu0 0.0
    %355 = vmatmul.mubr.f32.gmra.mxu0 %v285
    %v356 = vpop.f32.mrf.mxu0
    %v357 = vadd.f32 %v282, %v356
    %v358 = vpop.f32.mrf.mxu0
    %359 = vmatprep.mubr.f32.mxu0 0.0
    %360 = vmatmul.mubr.f32.gmra.mxu0 %v288
    %v361 = vpop.f32.mrf.mxu0
    %v362 = vadd.f32 %v282, %v361
    %v363 = vpop.f32.mrf.mxu0
    %364 = vdwg.mxu0
    %367 = vrot.lane.b32.xlu0 %v175, 120
    %v368 = vpop.permute.xlu0 %367
    %369 = vrot.lane.b32.xlu0 %v176, 120
    %v370 = vpop.permute.xlu0 %369
    %371 = vrot.lane.b32.xlu0 %v175, 112
    %v372 = vpop.permute.xlu0 %371
    %373 = vrot.lane.b32.xlu0 %v176, 112
    %v374 = vpop.permute.xlu0 %373
    %375 = vrot.lane.b32.xlu0 %v175, 104
    %v376 = vpop.permute.xlu0 %375
    %377 = vrot.lane.b32.xlu0 %v176, 104
    %v378 = vpop.permute.xlu0 %377
    %381 = vrot.lane.b32.xlu0 %v263, 120
    %v382 = vpop.permute.xlu0 %381
    %383 = vrot.lane.b32.xlu0 %v268, 120
    %v384 = vpop.permute.xlu0 %383
    %385 = vrot.lane.b32.xlu0 %v263, 112
    %v386 = vpop.permute.xlu0 %385
    %387 = vrot.lane.b32.xlu0 %v268, 112
    %v388 = vpop.permute.xlu0 %387
    %389 = vrot.lane.b32.xlu0 %v263, 104
    %v390 = vpop.permute.xlu0 %389
    %391 = vrot.lane.b32.xlu0 %v268, 104
    %v392 = vpop.permute.xlu0 %391
    %395 = vrot.lane.b32.xlu0 %v357, 120
    %v396 = vpop.permute.xlu0 %395
    %397 = vrot.lane.b32.xlu0 %v362, 120
    %v398 = vpop.permute.xlu0 %397
    %401 = vrot.lane.b32.xlu0 %v357, 112
    %v402 = vpop.permute.xlu0 %401
    %403 = vrot.lane.b32.xlu0 %v362, 112
    %v404 = vpop.permute.xlu0 %403
    %407 = vrot.lane.b32.xlu0 %v357, 104
    %v408 = vpop.permute.xlu0 %407
    %409 = vrot.lane.b32.xlu0 %v362, 104
    %v410 = vpop.permute.xlu0 %409
    %vm413 = vcmask 64512
    %v414 = vsel %vm413, %v175, 0
    %v416 = vsel %vm413, %v263, 0
    %418 = vmatprep.subr.mxu0 0.0
    %419 = vmatpush1.xpose.msra.mxu0 0.0
    %420 = vmatprep.subr.mxu0 0.0
    %421 = vmatpush1.xpose.msra.mxu0 0.0
    %422 = vmatprep.subr.mxu0 0.0
    %423 = vmatpush1.xpose.msra.mxu0 0.0
    %424 = vmatprep.subr.mxu0 0.0
    %425 = vmatpush1.xpose.msra.mxu0 0.0
    %426 = vmatprep.subr.mxu0 0.0
    %427 = vmatpush1.xpose.msra.mxu0 0.0
    %428 = vmatprep.subr.mxu0 0.0
    %429 = vmatpush1.xpose.msra.mxu0 0.0
    %430 = vmatprep.subr.mxu0 0.0
    %431 = vmatpush1.xpose.msra.mxu0 0.0
    %432 = vmatprep.subr.mxu0 0.0
    %433 = vmatpush1.xpose.msra.mxu0 0.0
    %434 = vmatprep.subr.mxu0 0.0
    %435 = vmatpush1.xpose.msra.mxu0 0.0
    %436 = vmatprep.subr.mxu0 0.0
    %437 = vmatpush1.xpose.msra.mxu0 0.0
    %438 = vmatprep.subr.mxu0 0.0
    %439 = vmatpush1.xpose.msra.mxu0 0.0
    %440 = vmatprep.subr.mxu0 0.0
    %441 = vmatpush1.xpose.msra.mxu0 0.0
    %442 = vmatprep.subr.mxu0 0.0
    %443 = vmatpush1.xpose.msra.mxu0 0.0
    %444 = vmatprep.subr.mxu0 0.0
    %445 = vmatpush1.xpose.msra.mxu0 0.0
    %446 = vmatprep.subr.mxu0 0.0
    %447 = vmatpush1.xpose.msra.mxu0 0.0
    %448 = vmatprep.subr.mxu0 0.0
    %449 = vmatpush1.xpose.msra.mxu0 %v416
    %450 = vmatprep.subr.mxu0 0.0
    %451 = vmatpush2.xpose.msra.mxu0 0.0
    %452 = vmatprep.subr.mxu0 0.0
    %453 = vmatpush2.xpose.msra.mxu0 0.0
    %454 = vmatprep.subr.mxu0 0.0
    %455 = vmatpush2.xpose.msra.mxu0 0.0
    %456 = vmatprep.subr.mxu0 0.0
    %457 = vmatpush2.xpose.msra.mxu0 0.0
    %458 = vmatprep.subr.mxu0 0.0
    %459 = vmatpush2.xpose.msra.mxu0 0.0
    %460 = vmatprep.subr.mxu0 0.0
    %461 = vmatpush2.xpose.msra.mxu0 0.0
    %462 = vmatprep.subr.mxu0 0.0
    %463 = vmatpush2.xpose.msra.mxu0 0.0
    %464 = vmatprep.subr.mxu0 0.0
    %465 = vmatpush2.xpose.msra.mxu0 0.0
    %466 = vmatprep.subr.mxu0 0.0
    %467 = vmatpush2.xpose.msra.mxu0 0.0
    %468 = vmatprep.subr.mxu0 0.0
    %469 = vmatpush2.xpose.msra.mxu0 0.0
    %470 = vmatprep.subr.mxu0 0.0
    %471 = vmatpush2.xpose.msra.mxu0 0.0
    %472 = vmatprep.subr.mxu0 0.0
    %473 = vmatpush2.xpose.msra.mxu0 0.0
    %474 = vmatprep.subr.mxu0 0.0
    %475 = vmatpush2.xpose.msra.mxu0 0.0
    %476 = vmatprep.subr.mxu0 0.0
    %477 = vmatpush2.xpose.msra.mxu0 0.0
    %478 = vmatprep.subr.mxu0 0.0
    %479 = vmatpush2.xpose.msra.mxu0 0.0
    %480 = vmatprep.subr.mxu0 0.0
    %481 = vmatpush2.xpose.msra.mxu0 0.0
    %482 = vmatprep.mubr.f32.mxu0 0.0
    %483 = vmatmul.mubr.f32.gmra.mxu0 %v414
    %v484 = vpop.f32.mrf.mxu0
    %v485 = vadd.f32 0.0, %v484
    %v486 = vpop.f32.mrf.mxu0
    %487 = vdwg.mxu0
    %v488 = vsel %vm413, %v176, 0
    %v490 = vsel %vm413, %v268, 0
    %492 = vmatprep.subr.mxu0 0.0
    %493 = vmatpush1.xpose.msra.mxu0 0.0
    %494 = vmatprep.subr.mxu0 0.0
    %495 = vmatpush1.xpose.msra.mxu0 0.0
    %496 = vmatprep.subr.mxu0 0.0
    %497 = vmatpush1.xpose.msra.mxu0 0.0
    %498 = vmatprep.subr.mxu0 0.0
    %499 = vmatpush1.xpose.msra.mxu0 0.0
    %500 = vmatprep.subr.mxu0 0.0
    %501 = vmatpush1.xpose.msra.mxu0 0.0
    %502 = vmatprep.subr.mxu0 0.0
    %503 = vmatpush1.xpose.msra.mxu0 0.0
    %504 = vmatprep.subr.mxu0 0.0
    %505 = vmatpush1.xpose.msra.mxu0 0.0
    %506 = vmatprep.subr.mxu0 0.0
    %507 = vmatpush1.xpose.msra.mxu0 0.0
    %508 = vmatprep.subr.mxu0 0.0
    %509 = vmatpush1.xpose.msra.mxu0 0.0
    %510 = vmatprep.subr.mxu0 0.0
    %511 = vmatpush1.xpose.msra.mxu0 0.0
    %512 = vmatprep.subr.mxu0 0.0
    %513 = vmatpush1.xpose.msra.mxu0 0.0
    %514 = vmatprep.subr.mxu0 0.0
    %515 = vmatpush1.xpose.msra.mxu0 0.0
    %516 = vmatprep.subr.mxu0 0.0
    %517 = vmatpush1.xpose.msra.mxu0 0.0
    %518 = vmatprep.subr.mxu0 0.0
    %519 = vmatpush1.xpose.msra.mxu0 0.0
    %520 = vmatprep.subr.mxu0 0.0
    %521 = vmatpush1.xpose.msra.mxu0 0.0
    %522 = vmatprep.subr.mxu0 0.0
    %523 = vmatpush1.xpose.msra.mxu0 %v490
    %524 = vmatprep.subr.mxu0 0.0
    %525 = vmatpush2.xpose.msra.mxu0 0.0
    %526 = vmatprep.subr.mxu0 0.0
    %527 = vmatpush2.xpose.msra.mxu0 0.0
    %528 = vmatprep.subr.mxu0 0.0
    %529 = vmatpush2.xpose.msra.mxu0 0.0
    %530 = vmatprep.subr.mxu0 0.0
    %531 = vmatpush2.xpose.msra.mxu0 0.0
    %532 = vmatprep.subr.mxu0 0.0
    %533 = vmatpush2.xpose.msra.mxu0 0.0
    %534 = vmatprep.subr.mxu0 0.0
    %535 = vmatpush2.xpose.msra.mxu0 0.0
    %536 = vmatprep.subr.mxu0 0.0
    %537 = vmatpush2.xpose.msra.mxu0 0.0
    %538 = vmatprep.subr.mxu0 0.0
    %539 = vmatpush2.xpose.msra.mxu0 0.0
    %540 = vmatprep.subr.mxu0 0.0
    %541 = vmatpush2.xpose.msra.mxu0 0.0
    %542 = vmatprep.subr.mxu0 0.0
    %543 = vmatpush2.xpose.msra.mxu0 0.0
    %544 = vmatprep.subr.mxu0 0.0
    %545 = vmatpush2.xpose.msra.mxu0 0.0
    %546 = vmatprep.subr.mxu0 0.0
    %547 = vmatpush2.xpose.msra.mxu0 0.0
    %548 = vmatprep.subr.mxu0 0.0
    %549 = vmatpush2.xpose.msra.mxu0 0.0
    %550 = vmatprep.subr.mxu0 0.0
    %551 = vmatpush2.xpose.msra.mxu0 0.0
    %552 = vmatprep.subr.mxu0 0.0
    %553 = vmatpush2.xpose.msra.mxu0 0.0
    %554 = vmatprep.subr.mxu0 0.0
    %555 = vmatpush2.xpose.msra.mxu0 0.0
    %556 = vmatprep.mubr.f32.mxu0 0.0
    %557 = vmatmul.mubr.f32.gmra.mxu0 %v488
    %v558 = vpop.f32.mrf.mxu0
    %v559 = vadd.f32 0.0, %v558
    %v560 = vpop.f32.mrf.mxu0
    %561 = vdwg.mxu0
    %v562 = vsel %vm413, %v368, 0
    %v564 = vsel %vm413, %v382, 0
    %566 = vmatprep.subr.mxu0 0.0
    %567 = vmatpush1.xpose.msra.mxu0 0.0
    %568 = vmatprep.subr.mxu0 0.0
    %569 = vmatpush1.xpose.msra.mxu0 0.0
    %570 = vmatprep.subr.mxu0 0.0
    %571 = vmatpush1.xpose.msra.mxu0 0.0
    %572 = vmatprep.subr.mxu0 0.0
    %573 = vmatpush1.xpose.msra.mxu0 0.0
    %574 = vmatprep.subr.mxu0 0.0
    %575 = vmatpush1.xpose.msra.mxu0 0.0
    %576 = vmatprep.subr.mxu0 0.0
    %577 = vmatpush1.xpose.msra.mxu0 0.0
    %578 = vmatprep.subr.mxu0 0.0
    %579 = vmatpush1.xpose.msra.mxu0 0.0
    %580 = vmatprep.subr.mxu0 0.0
    %581 = vmatpush1.xpose.msra.mxu0 0.0
    %582 = vmatprep.subr.mxu0 0.0
    %583 = vmatpush1.xpose.msra.mxu0 0.0
    %584 = vmatprep.subr.mxu0 0.0
    %585 = vmatpush1.xpose.msra.mxu0 0.0
    %586 = vmatprep.subr.mxu0 0.0
    %587 = vmatpush1.xpose.msra.mxu0 0.0
    %588 = vmatprep.subr.mxu0 0.0
    %589 = vmatpush1.xpose.msra.mxu0 0.0
    %590 = vmatprep.subr.mxu0 0.0
    %591 = vmatpush1.xpose.msra.mxu0 0.0
    %592 = vmatprep.subr.mxu0 0.0
    %593 = vmatpush1.xpose.msra.mxu0 0.0
    %594 = vmatprep.subr.mxu0 0.0
    %595 = vmatpush1.xpose.msra.mxu0 0.0
    %596 = vmatprep.subr.mxu0 0.0
    %597 = vmatpush1.xpose.msra.mxu0 %v564
    %598 = vmatprep.subr.mxu0 0.0
    %599 = vmatpush2.xpose.msra.mxu0 0.0
    %600 = vmatprep.subr.mxu0 0.0
    %601 = vmatpush2.xpose.msra.mxu0 0.0
    %602 = vmatprep.subr.mxu0 0.0
    %603 = vmatpush2.xpose.msra.mxu0 0.0
    %604 = vmatprep.subr.mxu0 0.0
    %605 = vmatpush2.xpose.msra.mxu0 0.0
    %606 = vmatprep.subr.mxu0 0.0
    %607 = vmatpush2.xpose.msra.mxu0 0.0
    %608 = vmatprep.subr.mxu0 0.0
    %609 = vmatpush2.xpose.msra.mxu0 0.0
    %610 = vmatprep.subr.mxu0 0.0
    %611 = vmatpush2.xpose.msra.mxu0 0.0
    %612 = vmatprep.subr.mxu0 0.0
    %613 = vmatpush2.xpose.msra.mxu0 0.0
    %614 = vmatprep.subr.mxu0 0.0
    %615 = vmatpush2.xpose.msra.mxu0 0.0
    %616 = vmatprep.subr.mxu0 0.0
    %617 = vmatpush2.xpose.msra.mxu0 0.0
    %618 = vmatprep.subr.mxu0 0.0
    %619 = vmatpush2.xpose.msra.mxu0 0.0
    %620 = vmatprep.subr.mxu0 0.0
    %621 = vmatpush2.xpose.msra.mxu0 0.0
    %622 = vmatprep.subr.mxu0 0.0
    %623 = vmatpush2.xpose.msra.mxu0 0.0
    %624 = vmatprep.subr.mxu0 0.0
    %625 = vmatpush2.xpose.msra.mxu0 0.0
    %626 = vmatprep.subr.mxu0 0.0
    %627 = vmatpush2.xpose.msra.mxu0 0.0
    %628 = vmatprep.subr.mxu0 0.0
    %629 = vmatpush2.xpose.msra.mxu0 0.0
    %630 = vmatprep.mubr.f32.mxu0 0.0
    %631 = vmatmul.mubr.f32.gmra.mxu0 %v562
    %v632 = vpop.f32.mrf.mxu0
    %v633 = vadd.f32 0.0, %v632
    %v634 = vpop.f32.mrf.mxu0
    %635 = vdwg.mxu0
    %v636 = vsel %vm413, %v370, 0
    %v638 = vsel %vm413, %v384, 0
    %640 = vmatprep.subr.mxu0 0.0
    %641 = vmatpush1.xpose.msra.mxu0 0.0
    %642 = vmatprep.subr.mxu0 0.0
    %643 = vmatpush1.xpose.msra.mxu0 0.0
    %644 = vmatprep.subr.mxu0 0.0
    %645 = vmatpush1.xpose.msra.mxu0 0.0
    %646 = vmatprep.subr.mxu0 0.0
    %647 = vmatpush1.xpose.msra.mxu0 0.0
    %648 = vmatprep.subr.mxu0 0.0
    %649 = vmatpush1.xpose.msra.mxu0 0.0
    %650 = vmatprep.subr.mxu0 0.0
    %651 = vmatpush1.xpose.msra.mxu0 0.0
    %652 = vmatprep.subr.mxu0 0.0
    %653 = vmatpush1.xpose.msra.mxu0 0.0
    %654 = vmatprep.subr.mxu0 0.0
    %655 = vmatpush1.xpose.msra.mxu0 0.0
    %656 = vmatprep.subr.mxu0 0.0
    %657 = vmatpush1.xpose.msra.mxu0 0.0
    %658 = vmatprep.subr.mxu0 0.0
    %659 = vmatpush1.xpose.msra.mxu0 0.0
    %660 = vmatprep.subr.mxu0 0.0
    %661 = vmatpush1.xpose.msra.mxu0 0.0
    %662 = vmatprep.subr.mxu0 0.0
    %663 = vmatpush1.xpose.msra.mxu0 0.0
    %664 = vmatprep.subr.mxu0 0.0
    %665 = vmatpush1.xpose.msra.mxu0 0.0
    %666 = vmatprep.subr.mxu0 0.0
    %667 = vmatpush1.xpose.msra.mxu0 0.0
    %668 = vmatprep.subr.mxu0 0.0
    %669 = vmatpush1.xpose.msra.mxu0 0.0
    %670 = vmatprep.subr.mxu0 0.0
    %671 = vmatpush1.xpose.msra.mxu0 %v638
    %672 = vmatprep.subr.mxu0 0.0
    %673 = vmatpush2.xpose.msra.mxu0 0.0
    %674 = vmatprep.subr.mxu0 0.0
    %675 = vmatpush2.xpose.msra.mxu0 0.0
    %676 = vmatprep.subr.mxu0 0.0
    %677 = vmatpush2.xpose.msra.mxu0 0.0
    %678 = vmatprep.subr.mxu0 0.0
    %679 = vmatpush2.xpose.msra.mxu0 0.0
    %680 = vmatprep.subr.mxu0 0.0
    %681 = vmatpush2.xpose.msra.mxu0 0.0
    %682 = vmatprep.subr.mxu0 0.0
    %683 = vmatpush2.xpose.msra.mxu0 0.0
    %684 = vmatprep.subr.mxu0 0.0
    %685 = vmatpush2.xpose.msra.mxu0 0.0
    %686 = vmatprep.subr.mxu0 0.0
    %687 = vmatpush2.xpose.msra.mxu0 0.0
    %688 = vmatprep.subr.mxu0 0.0
    %689 = vmatpush2.xpose.msra.mxu0 0.0
    %690 = vmatprep.subr.mxu0 0.0
    %691 = vmatpush2.xpose.msra.mxu0 0.0
    %692 = vmatprep.subr.mxu0 0.0
    %693 = vmatpush2.xpose.msra.mxu0 0.0
    %694 = vmatprep.subr.mxu0 0.0
    %695 = vmatpush2.xpose.msra.mxu0 0.0
    %696 = vmatprep.subr.mxu0 0.0
    %697 = vmatpush2.xpose.msra.mxu0 0.0
    %698 = vmatprep.subr.mxu0 0.0
    %699 = vmatpush2.xpose.msra.mxu0 0.0
    %700 = vmatprep.subr.mxu0 0.0
    %701 = vmatpush2.xpose.msra.mxu0 0.0
    %702 = vmatprep.subr.mxu0 0.0
    %703 = vmatpush2.xpose.msra.mxu0 0.0
    %704 = vmatprep.mubr.f32.mxu0 0.0
    %705 = vmatmul.mubr.f32.gmra.mxu0 %v636
    %v706 = vpop.f32.mrf.mxu0
    %v707 = vadd.f32 0.0, %v706
    %v708 = vpop.f32.mrf.mxu0
    %709 = vdwg.mxu0
    %v710 = vsel %vm413, %v372, 0
    %v712 = vsel %vm413, %v386, 0
    %714 = vmatprep.subr.mxu0 0.0
    %715 = vmatpush1.xpose.msra.mxu0 0.0
    %716 = vmatprep.subr.mxu0 0.0
    %717 = vmatpush1.xpose.msra.mxu0 0.0
    %718 = vmatprep.subr.mxu0 0.0
    %719 = vmatpush1.xpose.msra.mxu0 0.0
    %720 = vmatprep.subr.mxu0 0.0
    %721 = vmatpush1.xpose.msra.mxu0 0.0
    %722 = vmatprep.subr.mxu0 0.0
    %723 = vmatpush1.xpose.msra.mxu0 0.0
    %724 = vmatprep.subr.mxu0 0.0
    %725 = vmatpush1.xpose.msra.mxu0 0.0
    %726 = vmatprep.subr.mxu0 0.0
    %727 = vmatpush1.xpose.msra.mxu0 0.0
    %728 = vmatprep.subr.mxu0 0.0
    %729 = vmatpush1.xpose.msra.mxu0 0.0
    %730 = vmatprep.subr.mxu0 0.0
    %731 = vmatpush1.xpose.msra.mxu0 0.0
    %732 = vmatprep.subr.mxu0 0.0
    %733 = vmatpush1.xpose.msra.mxu0 0.0
    %734 = vmatprep.subr.mxu0 0.0
    %735 = vmatpush1.xpose.msra.mxu0 0.0
    %736 = vmatprep.subr.mxu0 0.0
    %737 = vmatpush1.xpose.msra.mxu0 0.0
    %738 = vmatprep.subr.mxu0 0.0
    %739 = vmatpush1.xpose.msra.mxu0 0.0
    %740 = vmatprep.subr.mxu0 0.0
    %741 = vmatpush1.xpose.msra.mxu0 0.0
    %742 = vmatprep.subr.mxu0 0.0
    %743 = vmatpush1.xpose.msra.mxu0 0.0
    %744 = vmatprep.subr.mxu0 0.0
    %745 = vmatpush1.xpose.msra.mxu0 %v712
    %746 = vmatprep.subr.mxu0 0.0
    %747 = vmatpush2.xpose.msra.mxu0 0.0
    %748 = vmatprep.subr.mxu0 0.0
    %749 = vmatpush2.xpose.msra.mxu0 0.0
    %750 = vmatprep.subr.mxu0 0.0
    %751 = vmatpush2.xpose.msra.mxu0 0.0
    %752 = vmatprep.subr.mxu0 0.0
    %753 = vmatpush2.xpose.msra.mxu0 0.0
    %754 = vmatprep.subr.mxu0 0.0
    %755 = vmatpush2.xpose.msra.mxu0 0.0
    %756 = vmatprep.subr.mxu0 0.0
    %757 = vmatpush2.xpose.msra.mxu0 0.0
    %758 = vmatprep.subr.mxu0 0.0
    %759 = vmatpush2.xpose.msra.mxu0 0.0
    %760 = vmatprep.subr.mxu0 0.0
    %761 = vmatpush2.xpose.msra.mxu0 0.0
    %762 = vmatprep.subr.mxu0 0.0
    %763 = vmatpush2.xpose.msra.mxu0 0.0
    %764 = vmatprep.subr.mxu0 0.0
    %765 = vmatpush2.xpose.msra.mxu0 0.0
    %766 = vmatprep.subr.mxu0 0.0
    %767 = vmatpush2.xpose.msra.mxu0 0.0
    %768 = vmatprep.subr.mxu0 0.0
    %769 = vmatpush2.xpose.msra.mxu0 0.0
    %770 = vmatprep.subr.mxu0 0.0
    %771 = vmatpush2.xpose.msra.mxu0 0.0
    %772 = vmatprep.subr.mxu0 0.0
    %773 = vmatpush2.xpose.msra.mxu0 0.0
    %774 = vmatprep.subr.mxu0 0.0
    %775 = vmatpush2.xpose.msra.mxu0 0.0
    %776 = vmatprep.subr.mxu0 0.0
    %777 = vmatpush2.xpose.msra.mxu0 0.0
    %778 = vmatprep.mubr.f32.mxu0 0.0
    %779 = vmatmul.mubr.f32.gmra.mxu0 %v710
    %v780 = vpop.f32.mrf.mxu0
    %v781 = vadd.f32 0.0, %v780
    %v782 = vpop.f32.mrf.mxu0
    %783 = vdwg.mxu0
    %v784 = vsel %vm413, %v374, 0
    %v786 = vsel %vm413, %v388, 0
    %788 = vmatprep.subr.mxu0 0.0
    %789 = vmatpush1.xpose.msra.mxu0 0.0
    %790 = vmatprep.subr.mxu0 0.0
    %791 = vmatpush1.xpose.msra.mxu0 0.0
    %792 = vmatprep.subr.mxu0 0.0
    %793 = vmatpush1.xpose.msra.mxu0 0.0
    %794 = vmatprep.subr.mxu0 0.0
    %795 = vmatpush1.xpose.msra.mxu0 0.0
    %796 = vmatprep.subr.mxu0 0.0
    %797 = vmatpush1.xpose.msra.mxu0 0.0
    %798 = vmatprep.subr.mxu0 0.0
    %799 = vmatpush1.xpose.msra.mxu0 0.0
    %800 = vmatprep.subr.mxu0 0.0
    %801 = vmatpush1.xpose.msra.mxu0 0.0
    %802 = vmatprep.subr.mxu0 0.0
    %803 = vmatpush1.xpose.msra.mxu0 0.0
    %804 = vmatprep.subr.mxu0 0.0
    %805 = vmatpush1.xpose.msra.mxu0 0.0
    %806 = vmatprep.subr.mxu0 0.0
    %807 = vmatpush1.xpose.msra.mxu0 0.0
    %808 = vmatprep.subr.mxu0 0.0
    %809 = vmatpush1.xpose.msra.mxu0 0.0
    %810 = vmatprep.subr.mxu0 0.0
    %811 = vmatpush1.xpose.msra.mxu0 0.0
    %812 = vmatprep.subr.mxu0 0.0
    %813 = vmatpush1.xpose.msra.mxu0 0.0
    %814 = vmatprep.subr.mxu0 0.0
    %815 = vmatpush1.xpose.msra.mxu0 0.0
    %816 = vmatprep.subr.mxu0 0.0
    %817 = vmatpush1.xpose.msra.mxu0 0.0
    %818 = vmatprep.subr.mxu0 0.0
    %819 = vmatpush1.xpose.msra.mxu0 %v786
    %820 = vmatprep.subr.mxu0 0.0
    %821 = vmatpush2.xpose.msra.mxu0 0.0
    %822 = vmatprep.subr.mxu0 0.0
    %823 = vmatpush2.xpose.msra.mxu0 0.0
    %824 = vmatprep.subr.mxu0 0.0
    %825 = vmatpush2.xpose.msra.mxu0 0.0
    %826 = vmatprep.subr.mxu0 0.0
    %827 = vmatpush2.xpose.msra.mxu0 0.0
    %828 = vmatprep.subr.mxu0 0.0
    %829 = vmatpush2.xpose.msra.mxu0 0.0
    %830 = vmatprep.subr.mxu0 0.0
    %831 = vmatpush2.xpose.msra.mxu0 0.0
    %832 = vmatprep.subr.mxu0 0.0
    %833 = vmatpush2.xpose.msra.mxu0 0.0
    %834 = vmatprep.subr.mxu0 0.0
    %835 = vmatpush2.xpose.msra.mxu0 0.0
    %836 = vmatprep.subr.mxu0 0.0
    %837 = vmatpush2.xpose.msra.mxu0 0.0
    %838 = vmatprep.subr.mxu0 0.0
    %839 = vmatpush2.xpose.msra.mxu0 0.0
    %840 = vmatprep.subr.mxu0 0.0
    %841 = vmatpush2.xpose.msra.mxu0 0.0
    %842 = vmatprep.subr.mxu0 0.0
    %843 = vmatpush2.xpose.msra.mxu0 0.0
    %844 = vmatprep.subr.mxu0 0.0
    %845 = vmatpush2.xpose.msra.mxu0 0.0
    %846 = vmatprep.subr.mxu0 0.0
    %847 = vmatpush2.xpose.msra.mxu0 0.0
    %848 = vmatprep.subr.mxu0 0.0
    %849 = vmatpush2.xpose.msra.mxu0 0.0
    %850 = vmatprep.subr.mxu0 0.0
    %851 = vmatpush2.xpose.msra.mxu0 0.0
    %852 = vmatprep.mubr.f32.mxu0 0.0
    %853 = vmatmul.mubr.f32.gmra.mxu0 %v784
    %v854 = vpop.f32.mrf.mxu0
    %v855 = vadd.f32 0.0, %v854
    %v856 = vpop.f32.mrf.mxu0
    %857 = vdwg.mxu0
    %v858 = vsel %vm413, %v376, 0
    %v860 = vsel %vm413, %v390, 0
    %862 = vmatprep.subr.mxu0 0.0
    %863 = vmatpush1.xpose.msra.mxu0 0.0
    %864 = vmatprep.subr.mxu0 0.0
    %865 = vmatpush1.xpose.msra.mxu0 0.0
    %866 = vmatprep.subr.mxu0 0.0
    %867 = vmatpush1.xpose.msra.mxu0 0.0
    %868 = vmatprep.subr.mxu0 0.0
    %869 = vmatpush1.xpose.msra.mxu0 0.0
    %870 = vmatprep.subr.mxu0 0.0
    %871 = vmatpush1.xpose.msra.mxu0 0.0
    %872 = vmatprep.subr.mxu0 0.0
    %873 = vmatpush1.xpose.msra.mxu0 0.0
    %874 = vmatprep.subr.mxu0 0.0
    %875 = vmatpush1.xpose.msra.mxu0 0.0
    %876 = vmatprep.subr.mxu0 0.0
    %877 = vmatpush1.xpose.msra.mxu0 0.0
    %878 = vmatprep.subr.mxu0 0.0
    %879 = vmatpush1.xpose.msra.mxu0 0.0
    %880 = vmatprep.subr.mxu0 0.0
    %881 = vmatpush1.xpose.msra.mxu0 0.0
    %882 = vmatprep.subr.mxu0 0.0
    %883 = vmatpush1.xpose.msra.mxu0 0.0
    %884 = vmatprep.subr.mxu0 0.0
    %885 = vmatpush1.xpose.msra.mxu0 0.0
    %886 = vmatprep.subr.mxu0 0.0
    %887 = vmatpush1.xpose.msra.mxu0 0.0
    %888 = vmatprep.subr.mxu0 0.0
    %889 = vmatpush1.xpose.msra.mxu0 0.0
    %890 = vmatprep.subr.mxu0 0.0
    %891 = vmatpush1.xpose.msra.mxu0 0.0
    %892 = vmatprep.subr.mxu0 0.0
    %893 = vmatpush1.xpose.msra.mxu0 %v860
    %894 = vmatprep.subr.mxu0 0.0
    %895 = vmatpush2.xpose.msra.mxu0 0.0
    %896 = vmatprep.subr.mxu0 0.0
    %897 = vmatpush2.xpose.msra.mxu0 0.0
    %898 = vmatprep.subr.mxu0 0.0
    %899 = vmatpush2.xpose.msra.mxu0 0.0
    %900 = vmatprep.subr.mxu0 0.0
    %901 = vmatpush2.xpose.msra.mxu0 0.0
    %902 = vmatprep.subr.mxu0 0.0
    %903 = vmatpush2.xpose.msra.mxu0 0.0
    %904 = vmatprep.subr.mxu0 0.0
    %905 = vmatpush2.xpose.msra.mxu0 0.0
    %906 = vmatprep.subr.mxu0 0.0
    %907 = vmatpush2.xpose.msra.mxu0 0.0
    %908 = vmatprep.subr.mxu0 0.0
    %909 = vmatpush2.xpose.msra.mxu0 0.0
    %910 = vmatprep.subr.mxu0 0.0
    %911 = vmatpush2.xpose.msra.mxu0 0.0
    %912 = vmatprep.subr.mxu0 0.0
    %913 = vmatpush2.xpose.msra.mxu0 0.0
    %914 = vmatprep.subr.mxu0 0.0
    %915 = vmatpush2.xpose.msra.mxu0 0.0
    %916 = vmatprep.subr.mxu0 0.0
    %917 = vmatpush2.xpose.msra.mxu0 0.0
    %918 = vmatprep.subr.mxu0 0.0
    %919 = vmatpush2.xpose.msra.mxu0 0.0
    %920 = vmatprep.subr.mxu0 0.0
    %921 = vmatpush2.xpose.msra.mxu0 0.0
    %922 = vmatprep.subr.mxu0 0.0
    %923 = vmatpush2.xpose.msra.mxu0 0.0
    %924 = vmatprep.subr.mxu0 0.0
    %925 = vmatpush2.xpose.msra.mxu0 0.0
    %926 = vmatprep.mubr.f32.mxu0 0.0
    %927 = vmatmul.mubr.f32.gmra.mxu0 %v858
    %v928 = vpop.f32.mrf.mxu0
    %v929 = vadd.f32 0.0, %v928
    %v930 = vpop.f32.mrf.mxu0
    %931 = vdwg.mxu0
    %v932 = vsel %vm413, %v378, 0
    %v934 = vsel %vm413, %v392, 0
    %936 = vmatprep.subr.mxu0 0.0
    %937 = vmatpush1.xpose.msra.mxu0 0.0
    %938 = vmatprep.subr.mxu0 0.0
    %939 = vmatpush1.xpose.msra.mxu0 0.0
    %940 = vmatprep.subr.mxu0 0.0
    %941 = vmatpush1.xpose.msra.mxu0 0.0
    %942 = vmatprep.subr.mxu0 0.0
    %943 = vmatpush1.xpose.msra.mxu0 0.0
    %944 = vmatprep.subr.mxu0 0.0
    %945 = vmatpush1.xpose.msra.mxu0 0.0
    %946 = vmatprep.subr.mxu0 0.0
    %947 = vmatpush1.xpose.msra.mxu0 0.0
    %948 = vmatprep.subr.mxu0 0.0
    %949 = vmatpush1.xpose.msra.mxu0 0.0
    %950 = vmatprep.subr.mxu0 0.0
    %951 = vmatpush1.xpose.msra.mxu0 0.0
    %952 = vmatprep.subr.mxu0 0.0
    %953 = vmatpush1.xpose.msra.mxu0 0.0
    %954 = vmatprep.subr.mxu0 0.0
    %955 = vmatpush1.xpose.msra.mxu0 0.0
    %956 = vmatprep.subr.mxu0 0.0
    %957 = vmatpush1.xpose.msra.mxu0 0.0
    %958 = vmatprep.subr.mxu0 0.0
    %959 = vmatpush1.xpose.msra.mxu0 0.0
    %960 = vmatprep.subr.mxu0 0.0
    %961 = vmatpush1.xpose.msra.mxu0 0.0
    %962 = vmatprep.subr.mxu0 0.0
    %963 = vmatpush1.xpose.msra.mxu0 0.0
    %964 = vmatprep.subr.mxu0 0.0
    %965 = vmatpush1.xpose.msra.mxu0 0.0
    %966 = vmatprep.subr.mxu0 0.0
    %967 = vmatpush1.xpose.msra.mxu0 %v934
    %968 = vmatprep.subr.mxu0 0.0
    %969 = vmatpush2.xpose.msra.mxu0 0.0
    %970 = vmatprep.subr.mxu0 0.0
    %971 = vmatpush2.xpose.msra.mxu0 0.0
    %972 = vmatprep.subr.mxu0 0.0
    %973 = vmatpush2.xpose.msra.mxu0 0.0
    %974 = vmatprep.subr.mxu0 0.0
    %975 = vmatpush2.xpose.msra.mxu0 0.0
    %976 = vmatprep.subr.mxu0 0.0
    %977 = vmatpush2.xpose.msra.mxu0 0.0
    %978 = vmatprep.subr.mxu0 0.0
    %979 = vmatpush2.xpose.msra.mxu0 0.0
    %980 = vmatprep.subr.mxu0 0.0
    %981 = vmatpush2.xpose.msra.mxu0 0.0
    %982 = vmatprep.subr.mxu0 0.0
    %983 = vmatpush2.xpose.msra.mxu0 0.0
    %984 = vmatprep.subr.mxu0 0.0
    %985 = vmatpush2.xpose.msra.mxu0 0.0
    %986 = vmatprep.subr.mxu0 0.0
    %987 = vmatpush2.xpose.msra.mxu0 0.0
    %988 = vmatprep.subr.mxu0 0.0
    %989 = vmatpush2.xpose.msra.mxu0 0.0
    %990 = vmatprep.subr.mxu0 0.0
    %991 = vmatpush2.xpose.msra.mxu0 0.0
    %992 = vmatprep.subr.mxu0 0.0
    %993 = vmatpush2.xpose.msra.mxu0 0.0
    %994 = vmatprep.subr.mxu0 0.0
    %995 = vmatpush2.xpose.msra.mxu0 0.0
    %996 = vmatprep.subr.mxu0 0.0
    %997 = vmatpush2.xpose.msra.mxu0 0.0
    %998 = vmatprep.subr.mxu0 0.0
    %999 = vmatpush2.xpose.msra.mxu0 0.0
    %1000 = vmatprep.mubr.f32.mxu0 0.0
    %1001 = vmatmul.mubr.f32.gmra.mxu0 %v932
    %v1002 = vpop.f32.mrf.mxu0
    %v1003 = vadd.f32 0.0, %v1002
    %v1004 = vpop.f32.mrf.mxu0
    %1005 = vdwg.mxu0
    %v1006 = vsel %vm413, %v485, -inf
    %1007 = vmax.xlane.f32.xlu0 %v1006
    %v1008 = vpop.xlane.xlu0 %1007
    %v1009 = vsel %vm413, %v559, -inf
    %1010 = vmax.xlane.f32.xlu0 %v1009
    %v1011 = vpop.xlane.xlu0 %1010
    %v1012 = vsel %vm413, %v633, -inf
    %1013 = vmax.xlane.f32.xlu0 %v1012
    %v1014 = vpop.xlane.xlu0 %1013
    %v1015 = vsel %vm413, %v707, -inf
    %1016 = vmax.xlane.f32.xlu0 %v1015
    %v1017 = vpop.xlane.xlu0 %1016
    %v1018 = vsel %vm413, %v781, -inf
    %1019 = vmax.xlane.f32.xlu0 %v1018
    %v1020 = vpop.xlane.xlu0 %1019
    %v1021 = vsel %vm413, %v855, -inf
    %1022 = vmax.xlane.f32.xlu0 %v1021
    %v1023 = vpop.xlane.xlu0 %1022
    %v1024 = vsel %vm413, %v929, -inf
    %1025 = vmax.xlane.f32.xlu0 %v1024
    %v1026 = vpop.xlane.xlu0 %1025
    %v1027 = vsel %vm413, %v1003, -inf
    %1028 = vmax.xlane.f32.xlu0 %v1027
    %v1029 = vpop.xlane.xlu0 %1028
    %v1030 = vsub.f32 %v485, %v1008
    %v1031 = vsub.f32 %v559, %v1011
    %v1032 = vsub.f32 %v633, %v1014
    %v1033 = vsub.f32 %v707, %v1017
    %v1034 = vsub.f32 %v781, %v1020
    %v1035 = vsub.f32 %v855, %v1023
    %v1036 = vsub.f32 %v929, %v1026
    %v1037 = vsub.f32 %v1003, %v1029
    %v1038 = vmul.f32 %v1030, 1.442695
    %v1039 = vpow.pop %v1038
    %v1040 = vmul.f32 %v1031, 1.442695
    %v1041 = vpow.pop %v1040
    %v1042 = vmul.f32 %v1032, 1.442695
    %v1043 = vpow.pop %v1042
    %v1044 = vmul.f32 %v1033, 1.442695
    %v1045 = vpow.pop %v1044
    %v1046 = vmul.f32 %v1034, 1.442695
    %v1047 = vpow.pop %v1046
    %v1048 = vmul.f32 %v1035, 1.442695
    %v1049 = vpow.pop %v1048
    %v1050 = vmul.f32 %v1036, 1.442695
    %v1051 = vpow.pop %v1050
    %v1052 = vmul.f32 %v1037, 1.442695
    %v1053 = vpow.pop %v1052
    %v1054 = vsel %vm413, %v1039, 0.0
    %1055 = vadd.xlane.f32.xlu0 %v1054
    %v1056 = vpop.xlane.xlu0 %1055
    %v1057 = vsel %vm413, %v1041, 0.0
    %1058 = vadd.xlane.f32.xlu0 %v1057
    %v1059 = vpop.xlane.xlu0 %1058
    %v1060 = vsel %vm413, %v1043, 0.0
    %1061 = vadd.xlane.f32.xlu0 %v1060
    %v1062 = vpop.xlane.xlu0 %1061
    %v1063 = vsel %vm413, %v1045, 0.0
    %1064 = vadd.xlane.f32.xlu0 %v1063
    %v1065 = vpop.xlane.xlu0 %1064
    %v1066 = vsel %vm413, %v1047, 0.0
    %1067 = vadd.xlane.f32.xlu0 %v1066
    %v1068 = vpop.xlane.xlu0 %1067
    %v1069 = vsel %vm413, %v1049, 0.0
    %1070 = vadd.xlane.f32.xlu0 %v1069
    %v1071 = vpop.xlane.xlu0 %1070
    %v1072 = vsel %vm413, %v1051, 0.0
    %1073 = vadd.xlane.f32.xlu0 %v1072
    %v1074 = vpop.xlane.xlu0 %1073
    %v1075 = vsel %vm413, %v1053, 0.0
    %1076 = vadd.xlane.f32.xlu0 %v1075
    %v1077 = vpop.xlane.xlu0 %1076
    %v1078 = vrcp.pop %v1056
    %v1079 = vrcp.pop %v1059
    %v1080 = vrcp.pop %v1062
    %v1081 = vrcp.pop %v1065
    %v1082 = vrcp.pop %v1068
    %v1083 = vrcp.pop %v1071
    %v1084 = vrcp.pop %v1074
    %v1085 = vrcp.pop %v1077
    %v1086 = vmul.f32 %v1039, %v1078
    %v1087 = vmul.f32 %v1041, %v1079
    %v1088 = vmul.f32 %v1043, %v1080
    %v1089 = vmul.f32 %v1045, %v1081
    %v1090 = vmul.f32 %v1047, %v1082
    %v1091 = vmul.f32 %v1049, %v1083
    %v1092 = vmul.f32 %v1051, %v1084
    %v1093 = vmul.f32 %v1053, %v1085
    %v1095 = vsel %vm413, %v1086, 0
    %1097 = vmatprep.subr.mxu0 0.0
    %1098 = vmatpush1.msra.mxu0 0.0
    %1099 = vmatprep.subr.mxu0 0.0
    %1100 = vmatpush1.msra.mxu0 0.0
    %1101 = vmatprep.subr.mxu0 0.0
    %1102 = vmatpush1.msra.mxu0 0.0
    %1103 = vmatprep.subr.mxu0 0.0
    %1104 = vmatpush1.msra.mxu0 0.0
    %1105 = vmatprep.subr.mxu0 0.0
    %1106 = vmatpush1.msra.mxu0 0.0
    %1107 = vmatprep.subr.mxu0 0.0
    %1108 = vmatpush1.msra.mxu0 0.0
    %1109 = vmatprep.subr.mxu0 0.0
    %1110 = vmatpush1.msra.mxu0 0.0
    %1111 = vmatprep.subr.mxu0 0.0
    %1112 = vmatpush1.msra.mxu0 0.0
    %1113 = vmatprep.subr.mxu0 0.0
    %1114 = vmatpush1.msra.mxu0 0.0
    %1115 = vmatprep.subr.mxu0 0.0
    %1116 = vmatpush1.msra.mxu0 0.0
    %1117 = vmatprep.subr.mxu0 0.0
    %1118 = vmatpush1.msra.mxu0 0.0
    %1119 = vmatprep.subr.mxu0 0.0
    %1120 = vmatpush1.msra.mxu0 0.0
    %1121 = vmatprep.subr.mxu0 0.0
    %1122 = vmatpush1.msra.mxu0 0.0
    %1123 = vmatprep.subr.mxu0 0.0
    %1124 = vmatpush1.msra.mxu0 0.0
    %1125 = vmatprep.subr.mxu0 0.0
    %1126 = vmatpush1.msra.mxu0 0.0
    %1127 = vmatprep.subr.mxu0 0.0
    %1128 = vmatpush1.msra.mxu0 %v357
    %1129 = vmatprep.subr.mxu0 0.0
    %1130 = vmatpush2.msra.mxu0 0.0
    %1131 = vmatprep.subr.mxu0 0.0
    %1132 = vmatpush2.msra.mxu0 0.0
    %1133 = vmatprep.subr.mxu0 0.0
    %1134 = vmatpush2.msra.mxu0 0.0
    %1135 = vmatprep.subr.mxu0 0.0
    %1136 = vmatpush2.msra.mxu0 0.0
    %1137 = vmatprep.subr.mxu0 0.0
    %1138 = vmatpush2.msra.mxu0 0.0
    %1139 = vmatprep.subr.mxu0 0.0
    %1140 = vmatpush2.msra.mxu0 0.0
    %1141 = vmatprep.subr.mxu0 0.0
    %1142 = vmatpush2.msra.mxu0 0.0
    %1143 = vmatprep.subr.mxu0 0.0
    %1144 = vmatpush2.msra.mxu0 0.0
    %1145 = vmatprep.subr.mxu0 0.0
    %1146 = vmatpush2.msra.mxu0 0.0
    %1147 = vmatprep.subr.mxu0 0.0
    %1148 = vmatpush2.msra.mxu0 0.0
    %1149 = vmatprep.subr.mxu0 0.0
    %1150 = vmatpush2.msra.mxu0 0.0
    %1151 = vmatprep.subr.mxu0 0.0
    %1152 = vmatpush2.msra.mxu0 0.0
    %1153 = vmatprep.subr.mxu0 0.0
    %1154 = vmatpush2.msra.mxu0 0.0
    %1155 = vmatprep.subr.mxu0 0.0
    %1156 = vmatpush2.msra.mxu0 0.0
    %1157 = vmatprep.subr.mxu0 0.0
    %1158 = vmatpush2.msra.mxu0 0.0
    %1159 = vmatprep.subr.mxu0 0.0
    %1160 = vmatpush2.msra.mxu0 0.0
    %1161 = vmatprep.mubr.f32.mxu0 0.0
    %1162 = vmatmul.mubr.f32.gmra.mxu0 %v1095
    %v1163 = vpop.f32.mrf.mxu0
    %v1164 = vadd.f32 0.0, %v1163
    %v1165 = vpop.f32.mrf.mxu0
    %1166 = vdwg.mxu0
    %v1168 = vsel %vm413, %v1087, 0
    %1170 = vmatprep.subr.mxu0 0.0
    %1171 = vmatpush1.msra.mxu0 0.0
    %1172 = vmatprep.subr.mxu0 0.0
    %1173 = vmatpush1.msra.mxu0 0.0
    %1174 = vmatprep.subr.mxu0 0.0
    %1175 = vmatpush1.msra.mxu0 0.0
    %1176 = vmatprep.subr.mxu0 0.0
    %1177 = vmatpush1.msra.mxu0 0.0
    %1178 = vmatprep.subr.mxu0 0.0
    %1179 = vmatpush1.msra.mxu0 0.0
    %1180 = vmatprep.subr.mxu0 0.0
    %1181 = vmatpush1.msra.mxu0 0.0
    %1182 = vmatprep.subr.mxu0 0.0
    %1183 = vmatpush1.msra.mxu0 0.0
    %1184 = vmatprep.subr.mxu0 0.0
    %1185 = vmatpush1.msra.mxu0 0.0
    %1186 = vmatprep.subr.mxu0 0.0
    %1187 = vmatpush1.msra.mxu0 0.0
    %1188 = vmatprep.subr.mxu0 0.0
    %1189 = vmatpush1.msra.mxu0 0.0
    %1190 = vmatprep.subr.mxu0 0.0
    %1191 = vmatpush1.msra.mxu0 0.0
    %1192 = vmatprep.subr.mxu0 0.0
    %1193 = vmatpush1.msra.mxu0 0.0
    %1194 = vmatprep.subr.mxu0 0.0
    %1195 = vmatpush1.msra.mxu0 0.0
    %1196 = vmatprep.subr.mxu0 0.0
    %1197 = vmatpush1.msra.mxu0 0.0
    %1198 = vmatprep.subr.mxu0 0.0
    %1199 = vmatpush1.msra.mxu0 0.0
    %1200 = vmatprep.subr.mxu0 0.0
    %1201 = vmatpush1.msra.mxu0 %v362
    %1202 = vmatprep.subr.mxu0 0.0
    %1203 = vmatpush2.msra.mxu0 0.0
    %1204 = vmatprep.subr.mxu0 0.0
    %1205 = vmatpush2.msra.mxu0 0.0
    %1206 = vmatprep.subr.mxu0 0.0
    %1207 = vmatpush2.msra.mxu0 0.0
    %1208 = vmatprep.subr.mxu0 0.0
    %1209 = vmatpush2.msra.mxu0 0.0
    %1210 = vmatprep.subr.mxu0 0.0
    %1211 = vmatpush2.msra.mxu0 0.0
    %1212 = vmatprep.subr.mxu0 0.0
    %1213 = vmatpush2.msra.mxu0 0.0
    %1214 = vmatprep.subr.mxu0 0.0
    %1215 = vmatpush2.msra.mxu0 0.0
    %1216 = vmatprep.subr.mxu0 0.0
    %1217 = vmatpush2.msra.mxu0 0.0
    %1218 = vmatprep.subr.mxu0 0.0
    %1219 = vmatpush2.msra.mxu0 0.0
    %1220 = vmatprep.subr.mxu0 0.0
    %1221 = vmatpush2.msra.mxu0 0.0
    %1222 = vmatprep.subr.mxu0 0.0
    %1223 = vmatpush2.msra.mxu0 0.0
    %1224 = vmatprep.subr.mxu0 0.0
    %1225 = vmatpush2.msra.mxu0 0.0
    %1226 = vmatprep.subr.mxu0 0.0
    %1227 = vmatpush2.msra.mxu0 0.0
    %1228 = vmatprep.subr.mxu0 0.0
    %1229 = vmatpush2.msra.mxu0 0.0
    %1230 = vmatprep.subr.mxu0 0.0
    %1231 = vmatpush2.msra.mxu0 0.0
    %1232 = vmatprep.subr.mxu0 0.0
    %1233 = vmatpush2.msra.mxu0 0.0
    %1234 = vmatprep.mubr.f32.mxu0 0.0
    %1235 = vmatmul.mubr.f32.gmra.mxu0 %v1168
    %v1236 = vpop.f32.mrf.mxu0
    %v1237 = vadd.f32 0.0, %v1236
    %v1238 = vpop.f32.mrf.mxu0
    %1239 = vdwg.mxu0
    %v1241 = vsel %vm413, %v1088, 0
    %1243 = vmatprep.subr.mxu0 0.0
    %1244 = vmatpush1.msra.mxu0 0.0
    %1245 = vmatprep.subr.mxu0 0.0
    %1246 = vmatpush1.msra.mxu0 0.0
    %1247 = vmatprep.subr.mxu0 0.0
    %1248 = vmatpush1.msra.mxu0 0.0
    %1249 = vmatprep.subr.mxu0 0.0
    %1250 = vmatpush1.msra.mxu0 0.0
    %1251 = vmatprep.subr.mxu0 0.0
    %1252 = vmatpush1.msra.mxu0 0.0
    %1253 = vmatprep.subr.mxu0 0.0
    %1254 = vmatpush1.msra.mxu0 0.0
    %1255 = vmatprep.subr.mxu0 0.0
    %1256 = vmatpush1.msra.mxu0 0.0
    %1257 = vmatprep.subr.mxu0 0.0
    %1258 = vmatpush1.msra.mxu0 0.0
    %1259 = vmatprep.subr.mxu0 0.0
    %1260 = vmatpush1.msra.mxu0 0.0
    %1261 = vmatprep.subr.mxu0 0.0
    %1262 = vmatpush1.msra.mxu0 0.0
    %1263 = vmatprep.subr.mxu0 0.0
    %1264 = vmatpush1.msra.mxu0 0.0
    %1265 = vmatprep.subr.mxu0 0.0
    %1266 = vmatpush1.msra.mxu0 0.0
    %1267 = vmatprep.subr.mxu0 0.0
    %1268 = vmatpush1.msra.mxu0 0.0
    %1269 = vmatprep.subr.mxu0 0.0
    %1270 = vmatpush1.msra.mxu0 0.0
    %1271 = vmatprep.subr.mxu0 0.0
    %1272 = vmatpush1.msra.mxu0 0.0
    %1273 = vmatprep.subr.mxu0 0.0
    %1274 = vmatpush1.msra.mxu0 %v396
    %1275 = vmatprep.subr.mxu0 0.0
    %1276 = vmatpush2.msra.mxu0 0.0
    %1277 = vmatprep.subr.mxu0 0.0
    %1278 = vmatpush2.msra.mxu0 0.0
    %1279 = vmatprep.subr.mxu0 0.0
    %1280 = vmatpush2.msra.mxu0 0.0
    %1281 = vmatprep.subr.mxu0 0.0
    %1282 = vmatpush2.msra.mxu0 0.0
    %1283 = vmatprep.subr.mxu0 0.0
    %1284 = vmatpush2.msra.mxu0 0.0
    %1285 = vmatprep.subr.mxu0 0.0
    %1286 = vmatpush2.msra.mxu0 0.0
    %1287 = vmatprep.subr.mxu0 0.0
    %1288 = vmatpush2.msra.mxu0 0.0
    %1289 = vmatprep.subr.mxu0 0.0
    %1290 = vmatpush2.msra.mxu0 0.0
    %1291 = vmatprep.subr.mxu0 0.0
    %1292 = vmatpush2.msra.mxu0 0.0
    %1293 = vmatprep.subr.mxu0 0.0
    %1294 = vmatpush2.msra.mxu0 0.0
    %1295 = vmatprep.subr.mxu0 0.0
    %1296 = vmatpush2.msra.mxu0 0.0
    %1297 = vmatprep.subr.mxu0 0.0
    %1298 = vmatpush2.msra.mxu0 0.0
    %1299 = vmatprep.subr.mxu0 0.0
    %1300 = vmatpush2.msra.mxu0 0.0
    %1301 = vmatprep.subr.mxu0 0.0
    %1302 = vmatpush2.msra.mxu0 0.0
    %1303 = vmatprep.subr.mxu0 0.0
    %1304 = vmatpush2.msra.mxu0 0.0
    %1305 = vmatprep.subr.mxu0 0.0
    %1306 = vmatpush2.msra.mxu0 0.0
    %1307 = vmatprep.mubr.f32.mxu0 0.0
    %1308 = vmatmul.mubr.f32.gmra.mxu0 %v1241
    %v1309 = vpop.f32.mrf.mxu0
    %v1310 = vadd.f32 0.0, %v1309
    %v1311 = vpop.f32.mrf.mxu0
    %1312 = vdwg.mxu0
    %v1314 = vsel %vm413, %v1089, 0
    %1316 = vmatprep.subr.mxu0 0.0
    %1317 = vmatpush1.msra.mxu0 0.0
    %1318 = vmatprep.subr.mxu0 0.0
    %1319 = vmatpush1.msra.mxu0 0.0
    %1320 = vmatprep.subr.mxu0 0.0
    %1321 = vmatpush1.msra.mxu0 0.0
    %1322 = vmatprep.subr.mxu0 0.0
    %1323 = vmatpush1.msra.mxu0 0.0
    %1324 = vmatprep.subr.mxu0 0.0
    %1325 = vmatpush1.msra.mxu0 0.0
    %1326 = vmatprep.subr.mxu0 0.0
    %1327 = vmatpush1.msra.mxu0 0.0
    %1328 = vmatprep.subr.mxu0 0.0
    %1329 = vmatpush1.msra.mxu0 0.0
    %1330 = vmatprep.subr.mxu0 0.0
    %1331 = vmatpush1.msra.mxu0 0.0
    %1332 = vmatprep.subr.mxu0 0.0
    %1333 = vmatpush1.msra.mxu0 0.0
    %1334 = vmatprep.subr.mxu0 0.0
    %1335 = vmatpush1.msra.mxu0 0.0
    %1336 = vmatprep.subr.mxu0 0.0
    %1337 = vmatpush1.msra.mxu0 0.0
    %1338 = vmatprep.subr.mxu0 0.0
    %1339 = vmatpush1.msra.mxu0 0.0
    %1340 = vmatprep.subr.mxu0 0.0
    %1341 = vmatpush1.msra.mxu0 0.0
    %1342 = vmatprep.subr.mxu0 0.0
    %1343 = vmatpush1.msra.mxu0 0.0
    %1344 = vmatprep.subr.mxu0 0.0
    %1345 = vmatpush1.msra.mxu0 0.0
    %1346 = vmatprep.subr.mxu0 0.0
    %1347 = vmatpush1.msra.mxu0 %v398
    %1348 = vmatprep.subr.mxu0 0.0
    %1349 = vmatpush2.msra.mxu0 0.0
    %1350 = vmatprep.subr.mxu0 0.0
    %1351 = vmatpush2.msra.mxu0 0.0
    %1352 = vmatprep.subr.mxu0 0.0
    %1353 = vmatpush2.msra.mxu0 0.0
    %1354 = vmatprep.subr.mxu0 0.0
    %1355 = vmatpush2.msra.mxu0 0.0
    %1356 = vmatprep.subr.mxu0 0.0
    %1357 = vmatpush2.msra.mxu0 0.0
    %1358 = vmatprep.subr.mxu0 0.0
    %1359 = vmatpush2.msra.mxu0 0.0
    %1360 = vmatprep.subr.mxu0 0.0
    %1361 = vmatpush2.msra.mxu0 0.0
    %1362 = vmatprep.subr.mxu0 0.0
    %1363 = vmatpush2.msra.mxu0 0.0
    %1364 = vmatprep.subr.mxu0 0.0
    %1365 = vmatpush2.msra.mxu0 0.0
    %1366 = vmatprep.subr.mxu0 0.0
    %1367 = vmatpush2.msra.mxu0 0.0
    %1368 = vmatprep.subr.mxu0 0.0
    %1369 = vmatpush2.msra.mxu0 0.0
    %1370 = vmatprep.subr.mxu0 0.0
    %1371 = vmatpush2.msra.mxu0 0.0
    %1372 = vmatprep.subr.mxu0 0.0
    %1373 = vmatpush2.msra.mxu0 0.0
    %1374 = vmatprep.subr.mxu0 0.0
    %1375 = vmatpush2.msra.mxu0 0.0
    %1376 = vmatprep.subr.mxu0 0.0
    %1377 = vmatpush2.msra.mxu0 0.0
    %1378 = vmatprep.subr.mxu0 0.0
    %1379 = vmatpush2.msra.mxu0 0.0
    %1380 = vmatprep.mubr.f32.mxu0 0.0
    %1381 = vmatmul.mubr.f32.gmra.mxu0 %v1314
    %v1382 = vpop.f32.mrf.mxu0
    %v1383 = vadd.f32 0.0, %v1382
    %v1384 = vpop.f32.mrf.mxu0
    %1385 = vdwg.mxu0
    %v1387 = vsel %vm413, %v1090, 0
    %1389 = vmatprep.subr.mxu0 0.0
    %1390 = vmatpush1.msra.mxu0 0.0
    %1391 = vmatprep.subr.mxu0 0.0
    %1392 = vmatpush1.msra.mxu0 0.0
    %1393 = vmatprep.subr.mxu0 0.0
    %1394 = vmatpush1.msra.mxu0 0.0
    %1395 = vmatprep.subr.mxu0 0.0
    %1396 = vmatpush1.msra.mxu0 0.0
    %1397 = vmatprep.subr.mxu0 0.0
    %1398 = vmatpush1.msra.mxu0 0.0
    %1399 = vmatprep.subr.mxu0 0.0
    %1400 = vmatpush1.msra.mxu0 0.0
    %1401 = vmatprep.subr.mxu0 0.0
    %1402 = vmatpush1.msra.mxu0 0.0
    %1403 = vmatprep.subr.mxu0 0.0
    %1404 = vmatpush1.msra.mxu0 0.0
    %1405 = vmatprep.subr.mxu0 0.0
    %1406 = vmatpush1.msra.mxu0 0.0
    %1407 = vmatprep.subr.mxu0 0.0
    %1408 = vmatpush1.msra.mxu0 0.0
    %1409 = vmatprep.subr.mxu0 0.0
    %1410 = vmatpush1.msra.mxu0 0.0
    %1411 = vmatprep.subr.mxu0 0.0
    %1412 = vmatpush1.msra.mxu0 0.0
    %1413 = vmatprep.subr.mxu0 0.0
    %1414 = vmatpush1.msra.mxu0 0.0
    %1415 = vmatprep.subr.mxu0 0.0
    %1416 = vmatpush1.msra.mxu0 0.0
    %1417 = vmatprep.subr.mxu0 0.0
    %1418 = vmatpush1.msra.mxu0 0.0
    %1419 = vmatprep.subr.mxu0 0.0
    %1420 = vmatpush1.msra.mxu0 %v402
    %1421 = vmatprep.subr.mxu0 0.0
    %1422 = vmatpush2.msra.mxu0 0.0
    %1423 = vmatprep.subr.mxu0 0.0
    %1424 = vmatpush2.msra.mxu0 0.0
    %1425 = vmatprep.subr.mxu0 0.0
    %1426 = vmatpush2.msra.mxu0 0.0
    %1427 = vmatprep.subr.mxu0 0.0
    %1428 = vmatpush2.msra.mxu0 0.0
    %1429 = vmatprep.subr.mxu0 0.0
    %1430 = vmatpush2.msra.mxu0 0.0
    %1431 = vmatprep.subr.mxu0 0.0
    %1432 = vmatpush2.msra.mxu0 0.0
    %1433 = vmatprep.subr.mxu0 0.0
    %1434 = vmatpush2.msra.mxu0 0.0
    %1435 = vmatprep.subr.mxu0 0.0
    %1436 = vmatpush2.msra.mxu0 0.0
    %1437 = vmatprep.subr.mxu0 0.0
    %1438 = vmatpush2.msra.mxu0 0.0
    %1439 = vmatprep.subr.mxu0 0.0
    %1440 = vmatpush2.msra.mxu0 0.0
    %1441 = vmatprep.subr.mxu0 0.0
    %1442 = vmatpush2.msra.mxu0 0.0
    %1443 = vmatprep.subr.mxu0 0.0
    %1444 = vmatpush2.msra.mxu0 0.0
    %1445 = vmatprep.subr.mxu0 0.0
    %1446 = vmatpush2.msra.mxu0 0.0
    %1447 = vmatprep.subr.mxu0 0.0
    %1448 = vmatpush2.msra.mxu0 0.0
    %1449 = vmatprep.subr.mxu0 0.0
    %1450 = vmatpush2.msra.mxu0 0.0
    %1451 = vmatprep.subr.mxu0 0.0
    %1452 = vmatpush2.msra.mxu0 0.0
    %1453 = vmatprep.mubr.f32.mxu0 0.0
    %1454 = vmatmul.mubr.f32.gmra.mxu0 %v1387
    %v1455 = vpop.f32.mrf.mxu0
    %v1456 = vadd.f32 0.0, %v1455
    %v1457 = vpop.f32.mrf.mxu0
    %1458 = vdwg.mxu0
    %v1460 = vsel %vm413, %v1091, 0
    %1462 = vmatprep.subr.mxu0 0.0
    %1463 = vmatpush1.msra.mxu0 0.0
    %1464 = vmatprep.subr.mxu0 0.0
    %1465 = vmatpush1.msra.mxu0 0.0
    %1466 = vmatprep.subr.mxu0 0.0
    %1467 = vmatpush1.msra.mxu0 0.0
    %1468 = vmatprep.subr.mxu0 0.0
    %1469 = vmatpush1.msra.mxu0 0.0
    %1470 = vmatprep.subr.mxu0 0.0
    %1471 = vmatpush1.msra.mxu0 0.0
    %1472 = vmatprep.subr.mxu0 0.0
    %1473 = vmatpush1.msra.mxu0 0.0
    %1474 = vmatprep.subr.mxu0 0.0
    %1475 = vmatpush1.msra.mxu0 0.0
    %1476 = vmatprep.subr.mxu0 0.0
    %1477 = vmatpush1.msra.mxu0 0.0
    %1478 = vmatprep.subr.mxu0 0.0
    %1479 = vmatpush1.msra.mxu0 0.0
    %1480 = vmatprep.subr.mxu0 0.0
    %1481 = vmatpush1.msra.mxu0 0.0
    %1482 = vmatprep.subr.mxu0 0.0
    %1483 = vmatpush1.msra.mxu0 0.0
    %1484 = vmatprep.subr.mxu0 0.0
    %1485 = vmatpush1.msra.mxu0 0.0
    %1486 = vmatprep.subr.mxu0 0.0
    %1487 = vmatpush1.msra.mxu0 0.0
    %1488 = vmatprep.subr.mxu0 0.0
    %1489 = vmatpush1.msra.mxu0 0.0
    %1490 = vmatprep.subr.mxu0 0.0
    %1491 = vmatpush1.msra.mxu0 0.0
    %1492 = vmatprep.subr.mxu0 0.0
    %1493 = vmatpush1.msra.mxu0 %v404
    %1494 = vmatprep.subr.mxu0 0.0
    %1495 = vmatpush2.msra.mxu0 0.0
    %1496 = vmatprep.subr.mxu0 0.0
    %1497 = vmatpush2.msra.mxu0 0.0
    %1498 = vmatprep.subr.mxu0 0.0
    %1499 = vmatpush2.msra.mxu0 0.0
    %1500 = vmatprep.subr.mxu0 0.0
    %1501 = vmatpush2.msra.mxu0 0.0
    %1502 = vmatprep.subr.mxu0 0.0
    %1503 = vmatpush2.msra.mxu0 0.0
    %1504 = vmatprep.subr.mxu0 0.0
    %1505 = vmatpush2.msra.mxu0 0.0
    %1506 = vmatprep.subr.mxu0 0.0
    %1507 = vmatpush2.msra.mxu0 0.0
    %1508 = vmatprep.subr.mxu0 0.0
    %1509 = vmatpush2.msra.mxu0 0.0
    %1510 = vmatprep.subr.mxu0 0.0
    %1511 = vmatpush2.msra.mxu0 0.0
    %1512 = vmatprep.subr.mxu0 0.0
    %1513 = vmatpush2.msra.mxu0 0.0
    %1514 = vmatprep.subr.mxu0 0.0
    %1515 = vmatpush2.msra.mxu0 0.0
    %1516 = vmatprep.subr.mxu0 0.0
    %1517 = vmatpush2.msra.mxu0 0.0
    %1518 = vmatprep.subr.mxu0 0.0
    %1519 = vmatpush2.msra.mxu0 0.0
    %1520 = vmatprep.subr.mxu0 0.0
    %1521 = vmatpush2.msra.mxu0 0.0
    %1522 = vmatprep.subr.mxu0 0.0
    %1523 = vmatpush2.msra.mxu0 0.0
    %1524 = vmatprep.subr.mxu0 0.0
    %1525 = vmatpush2.msra.mxu0 0.0
    %1526 = vmatprep.mubr.f32.mxu0 0.0
    %1527 = vmatmul.mubr.f32.gmra.mxu0 %v1460
    %v1528 = vpop.f32.mrf.mxu0
    %v1529 = vadd.f32 0.0, %v1528
    %v1530 = vpop.f32.mrf.mxu0
    %1531 = vdwg.mxu0
    %v1533 = vsel %vm413, %v1092, 0
    %1535 = vmatprep.subr.mxu0 0.0
    %1536 = vmatpush1.msra.mxu0 0.0
    %1537 = vmatprep.subr.mxu0 0.0
    %1538 = vmatpush1.msra.mxu0 0.0
    %1539 = vmatprep.subr.mxu0 0.0
    %1540 = vmatpush1.msra.mxu0 0.0
    %1541 = vmatprep.subr.mxu0 0.0
    %1542 = vmatpush1.msra.mxu0 0.0
    %1543 = vmatprep.subr.mxu0 0.0
    %1544 = vmatpush1.msra.mxu0 0.0
    %1545 = vmatprep.subr.mxu0 0.0
    %1546 = vmatpush1.msra.mxu0 0.0
    %1547 = vmatprep.subr.mxu0 0.0
    %1548 = vmatpush1.msra.mxu0 0.0
    %1549 = vmatprep.subr.mxu0 0.0
    %1550 = vmatpush1.msra.mxu0 0.0
    %1551 = vmatprep.subr.mxu0 0.0
    %1552 = vmatpush1.msra.mxu0 0.0
    %1553 = vmatprep.subr.mxu0 0.0
    %1554 = vmatpush1.msra.mxu0 0.0
    %1555 = vmatprep.subr.mxu0 0.0
    %1556 = vmatpush1.msra.mxu0 0.0
    %1557 = vmatprep.subr.mxu0 0.0
    %1558 = vmatpush1.msra.mxu0 0.0
    %1559 = vmatprep.subr.mxu0 0.0
    %1560 = vmatpush1.msra.mxu0 0.0
    %1561 = vmatprep.subr.mxu0 0.0
    %1562 = vmatpush1.msra.mxu0 0.0
    %1563 = vmatprep.subr.mxu0 0.0
    %1564 = vmatpush1.msra.mxu0 0.0
    %1565 = vmatprep.subr.mxu0 0.0
    %1566 = vmatpush1.msra.mxu0 %v408
    %1567 = vmatprep.subr.mxu0 0.0
    %1568 = vmatpush2.msra.mxu0 0.0
    %1569 = vmatprep.subr.mxu0 0.0
    %1570 = vmatpush2.msra.mxu0 0.0
    %1571 = vmatprep.subr.mxu0 0.0
    %1572 = vmatpush2.msra.mxu0 0.0
    %1573 = vmatprep.subr.mxu0 0.0
    %1574 = vmatpush2.msra.mxu0 0.0
    %1575 = vmatprep.subr.mxu0 0.0
    %1576 = vmatpush2.msra.mxu0 0.0
    %1577 = vmatprep.subr.mxu0 0.0
    %1578 = vmatpush2.msra.mxu0 0.0
    %1579 = vmatprep.subr.mxu0 0.0
    %1580 = vmatpush2.msra.mxu0 0.0
    %1581 = vmatprep.subr.mxu0 0.0
    %1582 = vmatpush2.msra.mxu0 0.0
    %1583 = vmatprep.subr.mxu0 0.0
    %1584 = vmatpush2.msra.mxu0 0.0
    %1585 = vmatprep.subr.mxu0 0.0
    %1586 = vmatpush2.msra.mxu0 0.0
    %1587 = vmatprep.subr.mxu0 0.0
    %1588 = vmatpush2.msra.mxu0 0.0
    %1589 = vmatprep.subr.mxu0 0.0
    %1590 = vmatpush2.msra.mxu0 0.0
    %1591 = vmatprep.subr.mxu0 0.0
    %1592 = vmatpush2.msra.mxu0 0.0
    %1593 = vmatprep.subr.mxu0 0.0
    %1594 = vmatpush2.msra.mxu0 0.0
    %1595 = vmatprep.subr.mxu0 0.0
    %1596 = vmatpush2.msra.mxu0 0.0
    %1597 = vmatprep.subr.mxu0 0.0
    %1598 = vmatpush2.msra.mxu0 0.0
    %1599 = vmatprep.mubr.f32.mxu0 0.0
    %1600 = vmatmul.mubr.f32.gmra.mxu0 %v1533
    %v1601 = vpop.f32.mrf.mxu0
    %v1602 = vadd.f32 0.0, %v1601
    %v1603 = vpop.f32.mrf.mxu0
    %1604 = vdwg.mxu0
    %v1606 = vsel %vm413, %v1093, 0
    %1608 = vmatprep.subr.mxu0 0.0
    %1609 = vmatpush1.msra.mxu0 0.0
    %1610 = vmatprep.subr.mxu0 0.0
    %1611 = vmatpush1.msra.mxu0 0.0
    %1612 = vmatprep.subr.mxu0 0.0
    %1613 = vmatpush1.msra.mxu0 0.0
    %1614 = vmatprep.subr.mxu0 0.0
    %1615 = vmatpush1.msra.mxu0 0.0
    %1616 = vmatprep.subr.mxu0 0.0
    %1617 = vmatpush1.msra.mxu0 0.0
    %1618 = vmatprep.subr.mxu0 0.0
    %1619 = vmatpush1.msra.mxu0 0.0
    %1620 = vmatprep.subr.mxu0 0.0
    %1621 = vmatpush1.msra.mxu0 0.0
    %1622 = vmatprep.subr.mxu0 0.0
    %1623 = vmatpush1.msra.mxu0 0.0
    %1624 = vmatprep.subr.mxu0 0.0
    %1625 = vmatpush1.msra.mxu0 0.0
    %1626 = vmatprep.subr.mxu0 0.0
    %1627 = vmatpush1.msra.mxu0 0.0
    %1628 = vmatprep.subr.mxu0 0.0
    %1629 = vmatpush1.msra.mxu0 0.0
    %1630 = vmatprep.subr.mxu0 0.0
    %1631 = vmatpush1.msra.mxu0 0.0
    %1632 = vmatprep.subr.mxu0 0.0
    %1633 = vmatpush1.msra.mxu0 0.0
    %1634 = vmatprep.subr.mxu0 0.0
    %1635 = vmatpush1.msra.mxu0 0.0
    %1636 = vmatprep.subr.mxu0 0.0
    %1637 = vmatpush1.msra.mxu0 0.0
    %1638 = vmatprep.subr.mxu0 0.0
    %1639 = vmatpush1.msra.mxu0 %v410
    %1640 = vmatprep.subr.mxu0 0.0
    %1641 = vmatpush2.msra.mxu0 0.0
    %1642 = vmatprep.subr.mxu0 0.0
    %1643 = vmatpush2.msra.mxu0 0.0
    %1644 = vmatprep.subr.mxu0 0.0
    %1645 = vmatpush2.msra.mxu0 0.0
    %1646 = vmatprep.subr.mxu0 0.0
    %1647 = vmatpush2.msra.mxu0 0.0
    %1648 = vmatprep.subr.mxu0 0.0
    %1649 = vmatpush2.msra.mxu0 0.0
    %1650 = vmatprep.subr.mxu0 0.0
    %1651 = vmatpush2.msra.mxu0 0.0
    %1652 = vmatprep.subr.mxu0 0.0
    %1653 = vmatpush2.msra.mxu0 0.0
    %1654 = vmatprep.subr.mxu0 0.0
    %1655 = vmatpush2.msra.mxu0 0.0
    %1656 = vmatprep.subr.mxu0 0.0
    %1657 = vmatpush2.msra.mxu0 0.0
    %1658 = vmatprep.subr.mxu0 0.0
    %1659 = vmatpush2.msra.mxu0 0.0
    %1660 = vmatprep.subr.mxu0 0.0
    %1661 = vmatpush2.msra.mxu0 0.0
    %1662 = vmatprep.subr.mxu0 0.0
    %1663 = vmatpush2.msra.mxu0 0.0
    %1664 = vmatprep.subr.mxu0 0.0
    %1665 = vmatpush2.msra.mxu0 0.0
    %1666 = vmatprep.subr.mxu0 0.0
    %1667 = vmatpush2.msra.mxu0 0.0
    %1668 = vmatprep.subr.mxu0 0.0
    %1669 = vmatpush2.msra.mxu0 0.0
    %1670 = vmatprep.subr.mxu0 0.0
    %1671 = vmatpush2.msra.mxu0 0.0
    %1672 = vmatprep.mubr.f32.mxu0 0.0
    %1673 = vmatmul.mubr.f32.gmra.mxu0 %v1606
    %v1674 = vpop.f32.mrf.mxu0
    %v1675 = vadd.f32 0.0, %v1674
    %v1676 = vpop.f32.mrf.mxu0
    %1677 = vdwg.mxu0
    %1680 = vrot.lane.b32.xlu0 %v1310, 8
    %v1681 = vpop.permute.xlu0 %1680
    %1682 = vrot.lane.b32.xlu0 %v1383, 8
    %v1683 = vpop.permute.xlu0 %1682
    %1688 = vrot.lane.b32.xlu0 %v1456, 16
    %v1689 = vpop.permute.xlu0 %1688
    %1690 = vrot.lane.b32.xlu0 %v1529, 16
    %v1691 = vpop.permute.xlu0 %1690
    %1696 = vrot.lane.b32.xlu0 %v1602, 24
    %v1697 = vpop.permute.xlu0 %1696
    %1698 = vrot.lane.b32.xlu0 %v1675, 24
    %v1699 = vpop.permute.xlu0 %1698
    %v1702 = vsel %vm413, %v1164, %v1681
    %v1703 = vsel %vm413, %v1237, %v1683
    %vm1704 = vcmask 130048
    %v1705 = vsel %vm1704, %v1702, %v1689
    %v1706 = vsel %vm1704, %v1703, %v1691
    %vm1707 = vcmask 195584
    %v1708 = vsel %vm1707, %v1705, %v1697
    %v1709 = vsel %vm1707, %v1706, %v1699
    %s1710 = scalar_lea.vmem [#allocation8], 96
    %v1711 = vld [vmem:[%s1710] sm:$0xff]
    %v1712 = vld [vmem:[%s1710 + $0x8] sm:$0xff]
    %v1713 = vld [vmem:[%s1710 + $0x10] sm:$0xff]
    %v1714 = vld [vmem:[%s1710 + $0x18] sm:$0xff]
    %s1715 = scalar_lea.vmem %s4, 3
    %v1716 = vld [vmem:[%s1715] sm:$0x1]
    %v1718 = vlaneseq
    %v1719 = vshrl.u32 %v1718, 7
    %v1720 = vsub.s32 0, %v1719
    %v1721 = vrot.slane %v1716, %v1720
    %v1724 = vsel %vm93, %v1708, 0
    %v1727 = vsel %vm93, %v1709, 0
    %1729 = vmatprep.subr.mxu0 0.0
    %1730 = vmatpush1.msra.mxu0 0.0
    %1731 = vmatprep.subr.mxu0 0.0
    %1732 = vmatpush1.msra.mxu0 0.0
    %1733 = vmatprep.subr.mxu0 0.0
    %1734 = vmatpush1.msra.mxu0 0.0
    %1735 = vmatprep.subr.mxu0 0.0
    %1736 = vmatpush1.msra.mxu0 0.0
    %1737 = vmatprep.subr.mxu0 0.0
    %1738 = vmatpush1.msra.mxu0 0.0
    %1739 = vmatprep.subr.mxu0 0.0
    %1740 = vmatpush1.msra.mxu0 0.0
    %1741 = vmatprep.subr.mxu0 0.0
    %1742 = vmatpush1.msra.mxu0 0.0
    %1743 = vmatprep.subr.mxu0 0.0
    %1744 = vmatpush1.msra.mxu0 0.0
    %1745 = vmatprep.subr.mxu0 0.0
    %1746 = vmatpush1.msra.mxu0 0.0
    %1747 = vmatprep.subr.mxu0 0.0
    %1748 = vmatpush1.msra.mxu0 0.0
    %1749 = vmatprep.subr.mxu0 0.0
    %1750 = vmatpush1.msra.mxu0 0.0
    %1751 = vmatprep.subr.mxu0 0.0
    %1752 = vmatpush1.msra.mxu0 0.0
    %1753 = vmatprep.subr.mxu0 0.0
    %1754 = vmatpush1.msra.mxu0 %v1714
    %1755 = vmatprep.subr.mxu0 0.0
    %1756 = vmatpush1.msra.mxu0 %v1713
    %1757 = vmatprep.subr.mxu0 0.0
    %1758 = vmatpush1.msra.mxu0 %v1712
    %1759 = vmatprep.subr.mxu0 0.0
    %1760 = vmatpush1.msra.mxu0 %v1711
    %1761 = vmatprep.subr.mxu0 0.0
    %1762 = vmatpush2.msra.mxu0 0.0
    %1763 = vmatprep.subr.mxu0 0.0
    %1764 = vmatpush2.msra.mxu0 0.0
    %1765 = vmatprep.subr.mxu0 0.0
    %1766 = vmatpush2.msra.mxu0 0.0
    %1767 = vmatprep.subr.mxu0 0.0
    %1768 = vmatpush2.msra.mxu0 0.0
    %1769 = vmatprep.subr.mxu0 0.0
    %1770 = vmatpush2.msra.mxu0 0.0
    %1771 = vmatprep.subr.mxu0 0.0
    %1772 = vmatpush2.msra.mxu0 0.0
    %1773 = vmatprep.subr.mxu0 0.0
    %1774 = vmatpush2.msra.mxu0 0.0
    %1775 = vmatprep.subr.mxu0 0.0
    %1776 = vmatpush2.msra.mxu0 0.0
    %1777 = vmatprep.subr.mxu0 0.0
    %1778 = vmatpush2.msra.mxu0 0.0
    %1779 = vmatprep.subr.mxu0 0.0
    %1780 = vmatpush2.msra.mxu0 0.0
    %1781 = vmatprep.subr.mxu0 0.0
    %1782 = vmatpush2.msra.mxu0 0.0
    %1783 = vmatprep.subr.mxu0 0.0
    %1784 = vmatpush2.msra.mxu0 0.0
    %1785 = vmatprep.subr.mxu0 0.0
    %1786 = vmatpush2.msra.mxu0 0.0
    %1787 = vmatprep.subr.mxu0 0.0
    %1788 = vmatpush2.msra.mxu0 0.0
    %1789 = vmatprep.subr.mxu0 0.0
    %1790 = vmatpush2.msra.mxu0 0.0
    %1791 = vmatprep.subr.mxu0 0.0
    %1792 = vmatpush2.msra.mxu0 0.0
    %1793 = vmatprep.mubr.f32.mxu0 0.0
    %1794 = vmatmul.mubr.f32.gmra.mxu0 %v1724
    %v1795 = vpop.f32.mrf.mxu0
    %v1796 = vadd.f32 %v1721, %v1795
    %v1797 = vpop.f32.mrf.mxu0
    %1798 = vmatprep.mubr.f32.mxu0 0.0
    %1799 = vmatmul.mubr.f32.gmra.mxu0 %v1727
    %v1800 = vpop.f32.mrf.mxu0
    %v1801 = vadd.f32 %v1721, %v1800
    %v1802 = vpop.f32.mrf.mxu0
    %1803 = vdwg.mxu0
    %1804 = vst.msk [vmem:[#allocation10] sm:$0xff] %vm93, %v1796
    %1805 = vst.msk [vmem:[#allocation10 + $0x8] sm:$0xff] %vm93, %v1801
    // Predicated region
    $region38: #{tpu_custom_call.1} parent=1 // pred_check
      _
    $region39: #{tpu_custom_call.1} parent=1 // pred_check_branch
      %1807 = sbr.rel (0) target = $region41
    $region40: #{tpu_custom_call.1} parent=1 // pred_region
      %s1809 = ssub.s32 256, 256
      %1810 = vsyncadd [#allocation4], %s1809
      %s1811 = sshll.u32 [#allocation10], 4
      %s1812 = int_to_ptr.vmem [resolvable:$true] %s1811
      %1817 = dma.vmem_to_hbm [thread:$0]  %s1812, 256, %s5, [#allocation4], 128, 128, 8
    $region41: #{tpu_custom_call.1} parent=1 // pred_fallthru
      _
    // Predicated region
    $region42: #{tpu_custom_call.1} parent=1 // pred_check
      _
    $region43: #{tpu_custom_call.1} parent=1 // pred_check_branch
      %1819 = sbr.rel (0) target = $region45
    $region44: #{tpu_custom_call.1} parent=1 // pred_region
      %1820 = dma.done [#allocation4], 256
    $region45: #{tpu_custom_call.1} parent=1 // pred_fallthru
      _
    %1821 = vsyncpa [#allocation3], 1
    %1822 = vsyncpa [#allocation6], 1
    %1823 = vsyncpa [#allocation9], 1
    %1824 = vsyncpa [#allocation4], 1

</llo_original>
